<compile_context>
chip_gen: v7x
topology: tpu7x:2x2x1
jax: 0.10.0
libtpu: 0.0.40
codegen_flags: <defaults>
</compile_context>

<pallas_src>
import functools

import jax
import jax.numpy as jnp
from jax import lax
from jax.experimental import pallas as pl
from jax.experimental.pallas import tpu as pltpu


def _adaptive_ltc_kernel(
    x_ref,          # [B, I]   f32
    wx_ref,         # [I, Hp]  f32   input weights of synthetic LTC cell
    wh_ref,         # [Hp, Hp] f32   recurrent weights; col H holds (1-dt/tau)*wha
    b_ref,          # [1, Hp]  f32   cell bias (pad 0)
    dtau_ref,       # [1, Hp]  f32   dt / tau (pad lanes 0 -> padded state stays 0)
    whadt_ref,      # [1, Hp]  f32   (dt/tau) * halting weight (pad 0)
    eh_ref,         # [1, Hp]  f32   one-hot selector of lane H
    bha_ref,        # [1, 1]   f32   halting-unit Linear bias (init -1.0)
    out_h_ref,      # [B, Hp]  f32   total_hidden (padded)
    out_pc_ref,     # [1, 1]   f32   ponder_cost
    out_steps_ref,  # [B, 1]   f32   total_steps + 1
    *,
    time_penalty: float,
    ponder_epsilon: float,
    time_limit: int,
    chunk: int,
):
    f32 = jnp.float32
    x = x_ref[...]
    wh = wh_ref[...]
    dt_over_tau = dtau_ref[...]
    one_minus_dt_tau = 1.0 - dt_over_tau        # pad lanes -> 1.0 (keeps pad state 0)
    wha_dt = whadt_ref[...]
    eh = eh_ref[...]
    bha = bha_ref[...]

    B = x.shape[0]
    Hp = wh.shape[0]

    # Loop-invariant hoists: one MXU input projection + bias for the whole call.
    xwb = jnp.dot(x, wx_ref[...], preferred_element_type=f32) + b_ref[...]
    budget = 1.0 - ponder_epsilon

    def act_step(carry):
        hidden, halt_accum, cont, tot_h, tot_rem, tot_steps = carry

        # --- synthetic LTC cell step: one recurrent MXU matmul + EUP tanh ----
        pre = xwb + jnp.dot(hidden, wh, preferred_element_type=f32)
        t = jnp.tanh(pre)

        # --- halting unit Linear(H,1)+Flatten+Sigmoid ------------------------
        # recurrent-state part of the logit came out of the matmul (pre[:, H]);
        # only the tanh part still needs a lane reduce, starting right after tanh.
        logits = jnp.sum(pre * eh + t * wha_dt, axis=-1, keepdims=True) + bha
        step_halt = jax.nn.sigmoid(logits)

        # leaky ODE step (two independent multiplies -> co-issue on VALU slots)
        hidden = one_minus_dt_tau * hidden + dt_over_tau * t

        # --- ACT bookkeeping (mirrors AdaptiveLTCCell.forward exactly; the
        # reference updates halt_accum BEFORE testing halt_accum+step_halt) ----
        masked_halt = cont * step_halt
        halt_accum = halt_accum + masked_halt
        ending = cont * (halt_accum + step_halt > budget).astype(f32)
        cont = cont - ending
        tot_steps = tot_steps + cont
        combined = masked_halt + ending * (1.0 - halt_accum)
        tot_h = tot_h + combined * hidden
        tot_rem = tot_rem + masked_halt
        return (hidden, halt_accum, cont, tot_h, tot_rem, tot_steps)

    init = (
        jnp.zeros((B, Hp), f32),   # hidden (hidden=None -> zeros)
        jnp.zeros((B, 1), f32),    # halt_accum
        jnp.ones((B, 1), f32),     # continuing mask (1.0 = True)
        jnp.zeros((B, Hp), f32),   # total_hidden
        jnp.zeros((B, 1), f32),    # total_remainder
        jnp.zeros((B, 1), f32),    # total_steps
    )

    n_steps = time_limit - 1
    n_chunks = n_steps // chunk
    n_tail = n_steps - n_chunks * chunk

    def run_steps(carry, n):
        # statically-bounded, fully unrolled block of ACT steps (LLO visibility)
        return lax.fori_loop(0, n, lambda _, c: act_step(c), carry, unroll=True)

    # Early-exit loop: run full chunks while any sample is still continuing.
    # Extra steps after all samples halt contribute exactly zero, so running a
    # whole chunk past the halt point (or the fixed tail below) is harmless.
    if n_chunks > 0:
        def cond(state):
            i, carry = state
            return jnp.logical_and(i < n_chunks, jnp.max(carry[2]) > 0.5)

        def body(state):
            i, carry = state
            return i + 1, run_steps(carry, chunk)

        _, carry = lax.while_loop(cond, body, (jnp.array(0, jnp.int32), init))
    else:
        carry = init

    # Fixed tail so the total step count is exactly time_limit - 1 when no
    # sample halts early (matches the reference loop bound).
    if n_tail > 0:
        carry = run_steps(carry, n_tail)

    hidden, halt_accum, cont, tot_h, tot_rem, tot_steps = carry

    # "else" branch of the PyTorch for/else: remainder for samples that never
    # halted.  If the loop broke early, cont == 0 -> adds zero.
    tot_h = tot_h + cont * (1.0 - halt_accum) * hidden

    out_h_ref[...] = tot_h
    out_pc_ref[...] = jnp.full((1, 1), -time_penalty, f32) * jnp.mean(tot_rem)
    out_steps_ref[...] = tot_steps + 1.0


def adaptive_ltc_cell(
    x, wx, wh, b, tau, wha, bha,
    *, time_penalty, ponder_epsilon=0.01, time_limit=100, dt=0.1, chunk=4,
):
    """Returns (total_hidden [B,H], ponder_cost [1,1], total_steps [B,1])."""
    B, _ = x.shape
    H = wh.shape[0]

    # Pad the state dim to a 128-lane multiple with at least one spare lane:
    # lane-dense (unmasked) stores, aligned recurrent matmul, and a free pad
    # column (index H) to fold the recurrent part of the halting logit into Wh.
    # Padded lanes stay exactly zero (wx/wh/b pads are 0 and dt/tau pad is 0).
    Hp = (-(-(H + 1) // 128)) * 128
    ph = Hp - H

    wx_p = jnp.pad(wx, ((0, 0), (0, ph)))
    b_p = jnp.pad(b, ((0, 0), (0, ph)))
    dt_over_tau = jnp.pad(dt / tau, ((0, 0), (0, ph)))              # [1, Hp], pad 0
    wha_row = wha.reshape(1, H)
    wha_dt = jnp.pad((dt / tau) * wha_row, ((0, 0), (0, ph)))       # [1, Hp], pad 0

    # Fold (1 - dt/tau) * wha into pad column H of Wh: pre[:, H] then equals the
    # old-hidden contribution to the halting logit, computed by the MXU for free.
    fold_col = ((1.0 - dt / tau) * wha_row).reshape(H)
    wh_p = jnp.pad(wh, ((0, ph), (0, ph)))
    wh_p = wh_p.at[:H, H].set(fold_col)
    eh = jnp.zeros((1, Hp), jnp.float32).at[0, H].set(1.0)

    kernel = functools.partial(
        _adaptive_ltc_kernel,
        time_penalty=float(time_penalty),
        ponder_epsilon=float(ponder_epsilon),
        time_limit=int(time_limit),
        chunk=max(1, int(chunk)),
    )
    vmem = pl.BlockSpec(memory_space=pltpu.MemorySpace.VMEM)
    total_hidden_p, ponder_cost, total_steps = pl.pallas_call(
        kernel,
        out_shape=(
            jax.ShapeDtypeStruct((B, Hp), jnp.float32),
            jax.ShapeDtypeStruct((1, 1), jnp.float32),
            jax.ShapeDtypeStruct((B, 1), jnp.float32),
        ),
        in_specs=[vmem] * 8,
        out_specs=(vmem, vmem, vmem),
    )(x, wx_p, wh_p, b_p, dt_over_tau, wha_dt, eh, bha)
    return total_hidden_p[:, :H], ponder_cost, total_steps


def _reference(x, wx, wh, b, tau, wha, bha, *, time_penalty, ponder_epsilon,
               time_limit, dt):
    """Pure-JAX port of AdaptiveLTCCell.forward with the same synthetic cell."""
    hi = jax.lax.Precision.HIGHEST
    B = x.shape[0]
    H = wh.shape[0]
    budget = 1.0 - ponder_epsilon
    hidden = jnp.zeros((B, H), jnp.float32)
    tot_h = jnp.zeros((B, H), jnp.float32)
    tot_rem = jnp.zeros((B, 1), jnp.float32)
    tot_steps = jnp.zeros((B, 1), jnp.float32)
    halt_accum = jnp.zeros((B, 1), jnp.float32)
    cont = jnp.ones((B, 1), jnp.float32)
    broke = False
    for _ in range(time_limit - 1):
        pre = jnp.dot(x, wx, precision=hi) + jnp.dot(hidden, wh, precision=hi) + b
        hidden = hidden + (dt / tau) * (jnp.tanh(pre) - hidden)
        step_halt = jax.nn.sigmoid(jnp.dot(hidden, wha, precision=hi) + bha)
        masked_halt = cont * step_halt
        halt_accum = halt_accum + masked_halt
        ending = cont * (halt_accum + step_halt > budget).astype(jnp.float32)
        cont = cont - ending
        tot_steps = tot_steps + cont
        combined = masked_halt + ending * (1.0 - halt_accum)
        tot_h = tot_h + combined * hidden
        tot_rem = tot_rem + masked_halt
        if not bool(jnp.any(cont > 0.5)):
            broke = True
            break
    if not broke:
        tot_h = tot_h + cont * (1.0 - halt_accum) * hidden
    pc = (-time_penalty * jnp.mean(tot_rem)).reshape(1, 1)
    return tot_h, pc, tot_steps + 1.0


if __name__ == "__main__":
    # Small shapes consistent with the module's forward:
    #   inputs: [batch, in_features]; ltc_cell.state_size = hidden size.
    B, I, H = 8, 16, 32
    time_penalty = 0.01
    ponder_epsilon = 0.01
    time_limit = 20
    dt = 0.1
    initial_halting_bias = -1.0

    key = jax.random.PRNGKey(0)
    kx, kwx, kwh, kb, ktau, kwha = jax.random.split(key, 6)

    x = jax.random.normal(kx, (B, I), jnp.float32)

    # Deterministic synthetic parameter init.
    wx = 0.3 * jax.random.normal(kwx, (I, H), jnp.float32)
    wh = 0.3 * jax.random.normal(kwh, (H, H), jnp.float32)
    b = 0.1 * jax.random.normal(kb, (1, H), jnp.float32)
    tau_raw = jax.random.normal(ktau, (1, H), jnp.float32)
    tau = jax.nn.softplus(tau_raw) + 0.5          # positive time constants (glue)
    wha = 0.5 * jax.random.normal(kwha, (H, 1), jnp.float32)
    bha = jnp.full((1, 1), initial_halting_bias, jnp.float32)

    total_hidden, ponder_cost, total_steps = adaptive_ltc_cell(
        x, wx, wh, b, tau, wha, bha,
        time_penalty=time_penalty,
        ponder_epsilon=ponder_epsilon,
        time_limit=time_limit,
        dt=dt,
    )
    jax.block_until_ready((total_hidden, ponder_cost, total_steps))

    assert total_hidden.shape == (B, H)
    assert ponder_cost.shape == (1, 1)
    assert total_steps.shape == (B, 1)
    assert bool(jnp.all(jnp.isfinite(total_hidden)))
    assert bool(jnp.all(jnp.isfinite(ponder_cost)))
    assert bool(jnp.all(total_steps >= 1.0))

    # Pure-JAX reference check (same synthetic cell, unfolded halting unit).
    ref_h, ref_pc, ref_steps = _reference(
        x, wx, wh, b, tau, wha, bha,
        time_penalty=time_penalty, ponder_epsilon=ponder_epsilon,
        time_limit=time_limit, dt=dt)
    assert bool(jnp.allclose(total_hidden, ref_h, atol=3e-3, rtol=3e-3))
    assert bool(jnp.allclose(ponder_cost, ref_pc, atol=1e-4, rtol=1e-3))
    assert bool(jnp.allclose(total_steps, ref_steps))

    print("KERNEL_OK")
</pallas_src>

<mosaic_0001>
module attributes {stable_mosaic.version = 11 : i64} {
  func.func @_adaptive_ltc_kernel(%arg0: memref<8x16xf32, #tpu.memory_space<vmem>>, %arg1: memref<16x128xf32, #tpu.memory_space<vmem>>, %arg2: memref<128x128xf32, #tpu.memory_space<vmem>>, %arg3: memref<1x128xf32, #tpu.memory_space<vmem>>, %arg4: memref<1x128xf32, #tpu.memory_space<vmem>>, %arg5: memref<1x128xf32, #tpu.memory_space<vmem>>, %arg6: memref<1x128xf32, #tpu.memory_space<vmem>>, %arg7: memref<1x1xf32, #tpu.memory_space<vmem>>, %arg8: memref<8x128xf32, #tpu.memory_space<vmem>>, %arg9: memref<1x1xf32, #tpu.memory_space<vmem>>, %arg10: memref<8x1xf32, #tpu.memory_space<vmem>>) attributes {dimension_semantics = [], scalar_prefetch = 0 : i64, scratch_operands = 0 : i64, tpu.core_type = #tpu.core_type<tc>} {
    %c0 = arith.constant 0 : index
    %c0_0 = arith.constant 0 : index
    %0 = vector.load %arg0[%c0, %c0_0] : memref<8x16xf32, #tpu.memory_space<vmem>>, vector<8x16xf32>
    %c0_1 = arith.constant 0 : index
    %c0_2 = arith.constant 0 : index
    %1 = vector.load %arg2[%c0_1, %c0_2] : memref<128x128xf32, #tpu.memory_space<vmem>>, vector<128x128xf32>
    %c0_3 = arith.constant 0 : index
    %c0_4 = arith.constant 0 : index
    %2 = vector.load %arg4[%c0_3, %c0_4] : memref<1x128xf32, #tpu.memory_space<vmem>>, vector<1x128xf32>
    %cst = arith.constant 1.000000e+00 : f32
    %3 = vector.broadcast %cst : f32 to vector<1x128xf32>
    %4 = arith.subf %3, %2 : vector<1x128xf32>
    %c0_5 = arith.constant 0 : index
    %c0_6 = arith.constant 0 : index
    %5 = vector.load %arg5[%c0_5, %c0_6] : memref<1x128xf32, #tpu.memory_space<vmem>>, vector<1x128xf32>
    %c0_7 = arith.constant 0 : index
    %c0_8 = arith.constant 0 : index
    %6 = vector.load %arg6[%c0_7, %c0_8] : memref<1x128xf32, #tpu.memory_space<vmem>>, vector<1x128xf32>
    %c0_9 = arith.constant 0 : index
    %c0_10 = arith.constant 0 : index
    %7 = vector.load %arg7[%c0_9, %c0_10] : memref<1x1xf32, #tpu.memory_space<vmem>>, vector<1x1xf32>
    %c0_11 = arith.constant 0 : index
    %c0_12 = arith.constant 0 : index
    %8 = vector.load %arg1[%c0_11, %c0_12] : memref<16x128xf32, #tpu.memory_space<vmem>>, vector<16x128xf32>
    %cst_13 = arith.constant dense<0.000000e+00> : vector<8x128xf32>
    %9 = tpu.matmul %0, %8, %cst_13 {dimension_numbers = #tpu.dot_dimension_numbers<[1], [0], [0], [1], [0, 0, 1, 1], [], []>} : vector<8x16xf32>, vector<16x128xf32>, vector<8x128xf32> -> vector<8x128xf32>
    %c0_14 = arith.constant 0 : index
    %c0_15 = arith.constant 0 : index
    %10 = vector.load %arg3[%c0_14, %c0_15] : memref<1x128xf32, #tpu.memory_space<vmem>>, vector<1x128xf32>
    %11 = vector.broadcast %10 : vector<1x128xf32> to vector<8x128xf32>
    %12 = arith.addf %9, %11 : vector<8x128xf32>
    %cst_16 = arith.constant 0.000000e+00 : f32
    %13 = vector.broadcast %cst_16 : f32 to vector<8x128xf32>
    %cst_17 = arith.constant 0.000000e+00 : f32
    %14 = vector.broadcast %cst_17 : f32 to vector<8x1xf32>
    %cst_18 = arith.constant 1.000000e+00 : f32
    %15 = vector.broadcast %cst_18 : f32 to vector<8x1xf32>
    %cst_19 = arith.constant 0.000000e+00 : f32
    %16 = vector.broadcast %cst_19 : f32 to vector<8x128xf32>
    %cst_20 = arith.constant 0.000000e+00 : f32
    %17 = vector.broadcast %cst_20 : f32 to vector<8x1xf32>
    %cst_21 = arith.constant 0.000000e+00 : f32
    %18 = vector.broadcast %cst_21 : f32 to vector<8x1xf32>
    %c0_i32 = arith.constant 0 : i32
    %19:7 = scf.while (%arg11 = %c0_i32, %arg12 = %13, %arg13 = %14, %arg14 = %15, %arg15 = %16, %arg16 = %17, %arg17 = %18) : (i32, vector<8x128xf32>, vector<8x1xf32>, vector<8x1xf32>, vector<8x128xf32>, vector<8x1xf32>, vector<8x1xf32>) -> (i32, vector<8x128xf32>, vector<8x1xf32>, vector<8x1xf32>, vector<8x128xf32>, vector<8x1xf32>, vector<8x1xf32>) {
      %c4_i32 = arith.constant 4 : i32
      %159 = arith.cmpi slt, %arg11, %c4_i32 : i32
      %160 = vector.shape_cast %arg14 : vector<8x1xf32> to vector<1x8x1xf32>
      %cst_49 = arith.constant dense<0xFF800000> : vector<1xf32>
      %161 = vector.multi_reduction <maximumf>, %160, %cst_49 [1, 2] : vector<1x8x1xf32> to vector<1xf32>
      %162 = vector.shape_cast %161 : vector<1xf32> to vector<1x1x1xf32>
      %163 = vector.extract %162[0, 0, 0] : f32 from vector<1x1x1xf32>
      %cst_50 = arith.constant 5.000000e-01 : f32
      %164 = arith.cmpf ogt, %163, %cst_50 : f32
      %165 = arith.andi %159, %164 : i1
      scf.condition(%165) %arg11, %arg12, %arg13, %arg14, %arg15, %arg16, %arg17 : i32, vector<8x128xf32>, vector<8x1xf32>, vector<8x1xf32>, vector<8x128xf32>, vector<8x1xf32>, vector<8x1xf32>
    } do {
    ^bb0(%arg11: i32, %arg12: vector<8x128xf32>, %arg13: vector<8x1xf32>, %arg14: vector<8x1xf32>, %arg15: vector<8x128xf32>, %arg16: vector<8x1xf32>, %arg17: vector<8x1xf32>):
      %c1_i32_49 = arith.constant 1 : i32
      %159 = arith.addi %arg11, %c1_i32_49 : i32
      %c0_i32_50 = arith.constant 0 : i32
      %cst_51 = arith.constant dense<0.000000e+00> : vector<8x128xf32>
      %160 = tpu.matmul %arg12, %1, %cst_51 {dimension_numbers = #tpu.dot_dimension_numbers<[1], [0], [0], [1], [0, 0, 1, 1], [], []>} : vector<8x128xf32>, vector<128x128xf32>, vector<8x128xf32> -> vector<8x128xf32>
      %161 = arith.addf %12, %160 : vector<8x128xf32>
      %162 = math.tanh %161 : vector<8x128xf32>
      %163 = vector.broadcast %6 : vector<1x128xf32> to vector<8x128xf32>
      %164 = arith.mulf %161, %163 : vector<8x128xf32>
      %165 = vector.broadcast %5 : vector<1x128xf32> to vector<8x128xf32>
      %166 = arith.mulf %162, %165 : vector<8x128xf32>
      %167 = arith.addf %164, %166 : vector<8x128xf32>
      %cst_52 = arith.constant dense<0.000000e+00> : vector<8xf32>
      %168 = vector.multi_reduction <add>, %167, %cst_52 [1] : vector<8x128xf32> to vector<8xf32>
      %169 = vector.shape_cast %168 : vector<8xf32> to vector<8x1xf32>
      %170 = vector.broadcast %7 : vector<1x1xf32> to vector<8x1xf32>
      %171 = arith.addf %169, %170 : vector<8x1xf32>
      %172 = arith.negf %171 : vector<8x1xf32>
      %173 = math.exp %172 : vector<8x1xf32>
      %cst_53 = arith.constant 1.000000e+00 : f32
      %174 = vector.broadcast %cst_53 : f32 to vector<8x1xf32>
      %175 = arith.addf %174, %173 : vector<8x1xf32>
      %176 = arith.divf %174, %175 : vector<8x1xf32>
      %177 = vector.broadcast %4 : vector<1x128xf32> to vector<8x128xf32>
      %178 = arith.mulf %177, %arg12 : vector<8x128xf32>
      %179 = vector.broadcast %2 : vector<1x128xf32> to vector<8x128xf32>
      %180 = arith.mulf %179, %162 : vector<8x128xf32>
      %181 = arith.addf %178, %180 : vector<8x128xf32>
      %182 = arith.mulf %arg14, %176 : vector<8x1xf32>
      %183 = arith.addf %arg13, %182 : vector<8x1xf32>
      %184 = arith.addf %183, %176 : vector<8x1xf32>
      %cst_54 = arith.constant 9.900000e-01 : f32
      %185 = vector.broadcast %cst_54 : f32 to vector<8x1xf32>
      %186 = arith.cmpf ogt, %184, %185 : vector<8x1xf32>
      %187 = arith.extui %186 : vector<8x1xi1> to vector<8x1xi32>
      %188 = arith.sitofp %187 : vector<8x1xi32> to vector<8x1xf32>
      %189 = arith.mulf %arg14, %188 : vector<8x1xf32>
      %190 = arith.subf %arg14, %189 : vector<8x1xf32>
      %191 = arith.addf %arg17, %190 : vector<8x1xf32>
      %cst_55 = arith.constant 1.000000e+00 : f32
      %192 = vector.broadcast %cst_55 : f32 to vector<8x1xf32>
      %193 = arith.subf %192, %183 : vector<8x1xf32>
      %194 = arith.mulf %189, %193 : vector<8x1xf32>
      %195 = arith.addf %182, %194 : vector<8x1xf32>
      %196 = vector.broadcast %195 : vector<8x1xf32> to vector<8x128xf32>
      %197 = arith.mulf %196, %181 : vector<8x128xf32>
      %198 = arith.addf %arg15, %197 : vector<8x128xf32>
      %199 = arith.addf %arg16, %182 : vector<8x1xf32>
      %c1_i32_56 = arith.constant 1 : i32
      %cst_57 = arith.constant dense<0.000000e+00> : vector<8x128xf32>
      %200 = tpu.matmul %181, %1, %cst_57 {dimension_numbers = #tpu.dot_dimension_numbers<[1], [0], [0], [1], [0, 0, 1, 1], [], []>} : vector<8x128xf32>, vector<128x128xf32>, vector<8x128xf32> -> vector<8x128xf32>
      %201 = arith.addf %12, %200 : vector<8x128xf32>
      %202 = math.tanh %201 : vector<8x128xf32>
      %203 = vector.broadcast %6 : vector<1x128xf32> to vector<8x128xf32>
      %204 = arith.mulf %201, %203 : vector<8x128xf32>
      %205 = vector.broadcast %5 : vector<1x128xf32> to vector<8x128xf32>
      %206 = arith.mulf %202, %205 : vector<8x128xf32>
      %207 = arith.addf %204, %206 : vector<8x128xf32>
      %cst_58 = arith.constant dense<0.000000e+00> : vector<8xf32>
      %208 = vector.multi_reduction <add>, %207, %cst_58 [1] : vector<8x128xf32> to vector<8xf32>
      %209 = vector.shape_cast %208 : vector<8xf32> to vector<8x1xf32>
      %210 = vector.broadcast %7 : vector<1x1xf32> to vector<8x1xf32>
      %211 = arith.addf %209, %210 : vector<8x1xf32>
      %212 = arith.negf %211 : vector<8x1xf32>
      %213 = math.exp %212 : vector<8x1xf32>
      %cst_59 = arith.constant 1.000000e+00 : f32
      %214 = vector.broadcast %cst_59 : f32 to vector<8x1xf32>
      %215 = arith.addf %214, %213 : vector<8x1xf32>
      %216 = arith.divf %214, %215 : vector<8x1xf32>
      %217 = vector.broadcast %4 : vector<1x128xf32> to vector<8x128xf32>
      %218 = arith.mulf %217, %181 : vector<8x128xf32>
      %219 = vector.broadcast %2 : vector<1x128xf32> to vector<8x128xf32>
      %220 = arith.mulf %219, %202 : vector<8x128xf32>
      %221 = arith.addf %218, %220 : vector<8x128xf32>
      %222 = arith.mulf %190, %216 : vector<8x1xf32>
      %223 = arith.addf %183, %222 : vector<8x1xf32>
      %224 = arith.addf %223, %216 : vector<8x1xf32>
      %cst_60 = arith.constant 9.900000e-01 : f32
      %225 = vector.broadcast %cst_60 : f32 to vector<8x1xf32>
      %226 = arith.cmpf ogt, %224, %225 : vector<8x1xf32>
      %227 = arith.extui %226 : vector<8x1xi1> to vector<8x1xi32>
      %228 = arith.sitofp %227 : vector<8x1xi32> to vector<8x1xf32>
      %229 = arith.mulf %190, %228 : vector<8x1xf32>
      %230 = arith.subf %190, %229 : vector<8x1xf32>
      %231 = arith.addf %191, %230 : vector<8x1xf32>
      %cst_61 = arith.constant 1.000000e+00 : f32
      %232 = vector.broadcast %cst_61 : f32 to vector<8x1xf32>
      %233 = arith.subf %232, %223 : vector<8x1xf32>
      %234 = arith.mulf %229, %233 : vector<8x1xf32>
      %235 = arith.addf %222, %234 : vector<8x1xf32>
      %236 = vector.broadcast %235 : vector<8x1xf32> to vector<8x128xf32>
      %237 = arith.mulf %236, %221 : vector<8x128xf32>
      %238 = arith.addf %198, %237 : vector<8x128xf32>
      %239 = arith.addf %199, %222 : vector<8x1xf32>
      %c2_i32_62 = arith.constant 2 : i32
      %cst_63 = arith.constant dense<0.000000e+00> : vector<8x128xf32>
      %240 = tpu.matmul %221, %1, %cst_63 {dimension_numbers = #tpu.dot_dimension_numbers<[1], [0], [0], [1], [0, 0, 1, 1], [], []>} : vector<8x128xf32>, vector<128x128xf32>, vector<8x128xf32> -> vector<8x128xf32>
      %241 = arith.addf %12, %240 : vector<8x128xf32>
      %242 = math.tanh %241 : vector<8x128xf32>
      %243 = vector.broadcast %6 : vector<1x128xf32> to vector<8x128xf32>
      %244 = arith.mulf %241, %243 : vector<8x128xf32>
      %245 = vector.broadcast %5 : vector<1x128xf32> to vector<8x128xf32>
      %246 = arith.mulf %242, %245 : vector<8x128xf32>
      %247 = arith.addf %244, %246 : vector<8x128xf32>
      %cst_64 = arith.constant dense<0.000000e+00> : vector<8xf32>
      %248 = vector.multi_reduction <add>, %247, %cst_64 [1] : vector<8x128xf32> to vector<8xf32>
      %249 = vector.shape_cast %248 : vector<8xf32> to vector<8x1xf32>
      %250 = vector.broadcast %7 : vector<1x1xf32> to vector<8x1xf32>
      %251 = arith.addf %249, %250 : vector<8x1xf32>
      %252 = arith.negf %251 : vector<8x1xf32>
      %253 = math.exp %252 : vector<8x1xf32>
      %cst_65 = arith.constant 1.000000e+00 : f32
      %254 = vector.broadcast %cst_65 : f32 to vector<8x1xf32>
      %255 = arith.addf %254, %253 : vector<8x1xf32>
      %256 = arith.divf %254, %255 : vector<8x1xf32>
      %257 = vector.broadcast %4 : vector<1x128xf32> to vector<8x128xf32>
      %258 = arith.mulf %257, %221 : vector<8x128xf32>
      %259 = vector.broadcast %2 : vector<1x128xf32> to vector<8x128xf32>
      %260 = arith.mulf %259, %242 : vector<8x128xf32>
      %261 = arith.addf %258, %260 : vector<8x128xf32>
      %262 = arith.mulf %230, %256 : vector<8x1xf32>
      %263 = arith.addf %223, %262 : vector<8x1xf32>
      %264 = arith.addf %263, %256 : vector<8x1xf32>
      %cst_66 = arith.constant 9.900000e-01 : f32
      %265 = vector.broadcast %cst_66 : f32 to vector<8x1xf32>
      %266 = arith.cmpf ogt, %264, %265 : vector<8x1xf32>
      %267 = arith.extui %266 : vector<8x1xi1> to vector<8x1xi32>
      %268 = arith.sitofp %267 : vector<8x1xi32> to vector<8x1xf32>
      %269 = arith.mulf %230, %268 : vector<8x1xf32>
      %270 = arith.subf %230, %269 : vector<8x1xf32>
      %271 = arith.addf %231, %270 : vector<8x1xf32>
      %cst_67 = arith.constant 1.000000e+00 : f32
      %272 = vector.broadcast %cst_67 : f32 to vector<8x1xf32>
      %273 = arith.subf %272, %263 : vector<8x1xf32>
      %274 = arith.mulf %269, %273 : vector<8x1xf32>
      %275 = arith.addf %262, %274 : vector<8x1xf32>
      %276 = vector.broadcast %275 : vector<8x1xf32> to vector<8x128xf32>
      %277 = arith.mulf %276, %261 : vector<8x128xf32>
      %278 = arith.addf %238, %277 : vector<8x128xf32>
      %279 = arith.addf %239, %262 : vector<8x1xf32>
      %c3_i32 = arith.constant 3 : i32
      %cst_68 = arith.constant dense<0.000000e+00> : vector<8x128xf32>
      %280 = tpu.matmul %261, %1, %cst_68 {dimension_numbers = #tpu.dot_dimension_numbers<[1], [0], [0], [1], [0, 0, 1, 1], [], []>} : vector<8x128xf32>, vector<128x128xf32>, vector<8x128xf32> -> vector<8x128xf32>
      %281 = arith.addf %12, %280 : vector<8x128xf32>
      %282 = math.tanh %281 : vector<8x128xf32>
      %283 = vector.broadcast %6 : vector<1x128xf32> to vector<8x128xf32>
      %284 = arith.mulf %281, %283 : vector<8x128xf32>
      %285 = vector.broadcast %5 : vector<1x128xf32> to vector<8x128xf32>
      %286 = arith.mulf %282, %285 : vector<8x128xf32>
      %287 = arith.addf %284, %286 : vector<8x128xf32>
      %cst_69 = arith.constant dense<0.000000e+00> : vector<8xf32>
      %288 = vector.multi_reduction <add>, %287, %cst_69 [1] : vector<8x128xf32> to vector<8xf32>
      %289 = vector.shape_cast %288 : vector<8xf32> to vector<8x1xf32>
      %290 = vector.broadcast %7 : vector<1x1xf32> to vector<8x1xf32>
      %291 = arith.addf %289, %290 : vector<8x1xf32>
      %292 = arith.negf %291 : vector<8x1xf32>
      %293 = math.exp %292 : vector<8x1xf32>
      %cst_70 = arith.constant 1.000000e+00 : f32
      %294 = vector.broadcast %cst_70 : f32 to vector<8x1xf32>
      %295 = arith.addf %294, %293 : vector<8x1xf32>
      %296 = arith.divf %294, %295 : vector<8x1xf32>
      %297 = vector.broadcast %4 : vector<1x128xf32> to vector<8x128xf32>
      %298 = arith.mulf %297, %261 : vector<8x128xf32>
      %299 = vector.broadcast %2 : vector<1x128xf32> to vector<8x128xf32>
      %300 = arith.mulf %299, %282 : vector<8x128xf32>
      %301 = arith.addf %298, %300 : vector<8x128xf32>
      %302 = arith.mulf %270, %296 : vector<8x1xf32>
      %303 = arith.addf %263, %302 : vector<8x1xf32>
      %304 = arith.addf %303, %296 : vector<8x1xf32>
      %cst_71 = arith.constant 9.900000e-01 : f32
      %305 = vector.broadcast %cst_71 : f32 to vector<8x1xf32>
      %306 = arith.cmpf ogt, %304, %305 : vector<8x1xf32>
      %307 = arith.extui %306 : vector<8x1xi1> to vector<8x1xi32>
      %308 = arith.sitofp %307 : vector<8x1xi32> to vector<8x1xf32>
      %309 = arith.mulf %270, %308 : vector<8x1xf32>
      %310 = arith.subf %270, %309 : vector<8x1xf32>
      %311 = arith.addf %271, %310 : vector<8x1xf32>
      %cst_72 = arith.constant 1.000000e+00 : f32
      %312 = vector.broadcast %cst_72 : f32 to vector<8x1xf32>
      %313 = arith.subf %312, %303 : vector<8x1xf32>
      %314 = arith.mulf %309, %313 : vector<8x1xf32>
      %315 = arith.addf %302, %314 : vector<8x1xf32>
      %316 = vector.broadcast %315 : vector<8x1xf32> to vector<8x128xf32>
      %317 = arith.mulf %316, %301 : vector<8x128xf32>
      %318 = arith.addf %278, %317 : vector<8x128xf32>
      %319 = arith.addf %279, %302 : vector<8x1xf32>
      %c4_i32 = arith.constant 4 : i32
      scf.yield %159, %301, %303, %310, %318, %319, %311 : i32, vector<8x128xf32>, vector<8x1xf32>, vector<8x1xf32>, vector<8x128xf32>, vector<8x1xf32>, vector<8x1xf32>
    }
    %c0_i32_22 = arith.constant 0 : i32
    %cst_23 = arith.constant dense<0.000000e+00> : vector<8x128xf32>
    %20 = tpu.matmul %19#1, %1, %cst_23 {dimension_numbers = #tpu.dot_dimension_numbers<[1], [0], [0], [1], [0, 0, 1, 1], [], []>} : vector<8x128xf32>, vector<128x128xf32>, vector<8x128xf32> -> vector<8x128xf32>
    %21 = arith.addf %12, %20 : vector<8x128xf32>
    %22 = math.tanh %21 : vector<8x128xf32>
    %23 = vector.broadcast %6 : vector<1x128xf32> to vector<8x128xf32>
    %24 = arith.mulf %21, %23 : vector<8x128xf32>
    %25 = vector.broadcast %5 : vector<1x128xf32> to vector<8x128xf32>
    %26 = arith.mulf %22, %25 : vector<8x128xf32>
    %27 = arith.addf %24, %26 : vector<8x128xf32>
    %cst_24 = arith.constant dense<0.000000e+00> : vector<8xf32>
    %28 = vector.multi_reduction <add>, %27, %cst_24 [1] : vector<8x128xf32> to vector<8xf32>
    %29 = vector.shape_cast %28 : vector<8xf32> to vector<8x1xf32>
    %30 = vector.broadcast %7 : vector<1x1xf32> to vector<8x1xf32>
    %31 = arith.addf %29, %30 : vector<8x1xf32>
    %32 = arith.negf %31 : vector<8x1xf32>
    %33 = math.exp %32 : vector<8x1xf32>
    %cst_25 = arith.constant 1.000000e+00 : f32
    %34 = vector.broadcast %cst_25 : f32 to vector<8x1xf32>
    %35 = arith.addf %34, %33 : vector<8x1xf32>
    %36 = arith.divf %34, %35 : vector<8x1xf32>
    %37 = vector.broadcast %4 : vector<1x128xf32> to vector<8x128xf32>
    %38 = arith.mulf %37, %19#1 : vector<8x128xf32>
    %39 = vector.broadcast %2 : vector<1x128xf32> to vector<8x128xf32>
    %40 = arith.mulf %39, %22 : vector<8x128xf32>
    %41 = arith.addf %38, %40 : vector<8x128xf32>
    %42 = arith.mulf %19#3, %36 : vector<8x1xf32>
    %43 = arith.addf %19#2, %42 : vector<8x1xf32>
    %44 = arith.addf %43, %36 : vector<8x1xf32>
    %cst_26 = arith.constant 9.900000e-01 : f32
    %45 = vector.broadcast %cst_26 : f32 to vector<8x1xf32>
    %46 = arith.cmpf ogt, %44, %45 : vector<8x1xf32>
    %47 = arith.extui %46 : vector<8x1xi1> to vector<8x1xi32>
    %48 = arith.sitofp %47 : vector<8x1xi32> to vector<8x1xf32>
    %49 = arith.mulf %19#3, %48 : vector<8x1xf32>
    %50 = arith.subf %19#3, %49 : vector<8x1xf32>
    %51 = arith.addf %19#6, %50 : vector<8x1xf32>
    %cst_27 = arith.constant 1.000000e+00 : f32
    %52 = vector.broadcast %cst_27 : f32 to vector<8x1xf32>
    %53 = arith.subf %52, %43 : vector<8x1xf32>
    %54 = arith.mulf %49, %53 : vector<8x1xf32>
    %55 = arith.addf %42, %54 : vector<8x1xf32>
    %56 = vector.broadcast %55 : vector<8x1xf32> to vector<8x128xf32>
    %57 = arith.mulf %56, %41 : vector<8x128xf32>
    %58 = arith.addf %19#4, %57 : vector<8x128xf32>
    %59 = arith.addf %19#5, %42 : vector<8x1xf32>
    %c1_i32 = arith.constant 1 : i32
    %cst_28 = arith.constant dense<0.000000e+00> : vector<8x128xf32>
    %60 = tpu.matmul %41, %1, %cst_28 {dimension_numbers = #tpu.dot_dimension_numbers<[1], [0], [0], [1], [0, 0, 1, 1], [], []>} : vector<8x128xf32>, vector<128x128xf32>, vector<8x128xf32> -> vector<8x128xf32>
    %61 = arith.addf %12, %60 : vector<8x128xf32>
    %62 = math.tanh %61 : vector<8x128xf32>
    %63 = vector.broadcast %6 : vector<1x128xf32> to vector<8x128xf32>
    %64 = arith.mulf %61, %63 : vector<8x128xf32>
    %65 = vector.broadcast %5 : vector<1x128xf32> to vector<8x128xf32>
    %66 = arith.mulf %62, %65 : vector<8x128xf32>
    %67 = arith.addf %64, %66 : vector<8x128xf32>
    %cst_29 = arith.constant dense<0.000000e+00> : vector<8xf32>
    %68 = vector.multi_reduction <add>, %67, %cst_29 [1] : vector<8x128xf32> to vector<8xf32>
    %69 = vector.shape_cast %68 : vector<8xf32> to vector<8x1xf32>
    %70 = vector.broadcast %7 : vector<1x1xf32> to vector<8x1xf32>
    %71 = arith.addf %69, %70 : vector<8x1xf32>
    %72 = arith.negf %71 : vector<8x1xf32>
    %73 = math.exp %72 : vector<8x1xf32>
    %cst_30 = arith.constant 1.000000e+00 : f32
    %74 = vector.broadcast %cst_30 : f32 to vector<8x1xf32>
    %75 = arith.addf %74, %73 : vector<8x1xf32>
    %76 = arith.divf %74, %75 : vector<8x1xf32>
    %77 = vector.broadcast %4 : vector<1x128xf32> to vector<8x128xf32>
    %78 = arith.mulf %77, %41 : vector<8x128xf32>
    %79 = vector.broadcast %2 : vector<1x128xf32> to vector<8x128xf32>
    %80 = arith.mulf %79, %62 : vector<8x128xf32>
    %81 = arith.addf %78, %80 : vector<8x128xf32>
    %82 = arith.mulf %50, %76 : vector<8x1xf32>
    %83 = arith.addf %43, %82 : vector<8x1xf32>
    %84 = arith.addf %83, %76 : vector<8x1xf32>
    %cst_31 = arith.constant 9.900000e-01 : f32
    %85 = vector.broadcast %cst_31 : f32 to vector<8x1xf32>
    %86 = arith.cmpf ogt, %84, %85 : vector<8x1xf32>
    %87 = arith.extui %86 : vector<8x1xi1> to vector<8x1xi32>
    %88 = arith.sitofp %87 : vector<8x1xi32> to vector<8x1xf32>
    %89 = arith.mulf %50, %88 : vector<8x1xf32>
    %90 = arith.subf %50, %89 : vector<8x1xf32>
    %91 = arith.addf %51, %90 : vector<8x1xf32>
    %cst_32 = arith.constant 1.000000e+00 : f32
    %92 = vector.broadcast %cst_32 : f32 to vector<8x1xf32>
    %93 = arith.subf %92, %83 : vector<8x1xf32>
    %94 = arith.mulf %89, %93 : vector<8x1xf32>
    %95 = arith.addf %82, %94 : vector<8x1xf32>
    %96 = vector.broadcast %95 : vector<8x1xf32> to vector<8x128xf32>
    %97 = arith.mulf %96, %81 : vector<8x128xf32>
    %98 = arith.addf %58, %97 : vector<8x128xf32>
    %99 = arith.addf %59, %82 : vector<8x1xf32>
    %c2_i32 = arith.constant 2 : i32
    %cst_33 = arith.constant dense<0.000000e+00> : vector<8x128xf32>
    %100 = tpu.matmul %81, %1, %cst_33 {dimension_numbers = #tpu.dot_dimension_numbers<[1], [0], [0], [1], [0, 0, 1, 1], [], []>} : vector<8x128xf32>, vector<128x128xf32>, vector<8x128xf32> -> vector<8x128xf32>
    %101 = arith.addf %12, %100 : vector<8x128xf32>
    %102 = math.tanh %101 : vector<8x128xf32>
    %103 = vector.broadcast %6 : vector<1x128xf32> to vector<8x128xf32>
    %104 = arith.mulf %101, %103 : vector<8x128xf32>
    %105 = vector.broadcast %5 : vector<1x128xf32> to vector<8x128xf32>
    %106 = arith.mulf %102, %105 : vector<8x128xf32>
    %107 = arith.addf %104, %106 : vector<8x128xf32>
    %cst_34 = arith.constant dense<0.000000e+00> : vector<8xf32>
    %108 = vector.multi_reduction <add>, %107, %cst_34 [1] : vector<8x128xf32> to vector<8xf32>
    %109 = vector.shape_cast %108 : vector<8xf32> to vector<8x1xf32>
    %110 = vector.broadcast %7 : vector<1x1xf32> to vector<8x1xf32>
    %111 = arith.addf %109, %110 : vector<8x1xf32>
    %112 = arith.negf %111 : vector<8x1xf32>
    %113 = math.exp %112 : vector<8x1xf32>
    %cst_35 = arith.constant 1.000000e+00 : f32
    %114 = vector.broadcast %cst_35 : f32 to vector<8x1xf32>
    %115 = arith.addf %114, %113 : vector<8x1xf32>
    %116 = arith.divf %114, %115 : vector<8x1xf32>
    %117 = vector.broadcast %4 : vector<1x128xf32> to vector<8x128xf32>
    %118 = arith.mulf %117, %81 : vector<8x128xf32>
    %119 = vector.broadcast %2 : vector<1x128xf32> to vector<8x128xf32>
    %120 = arith.mulf %119, %102 : vector<8x128xf32>
    %121 = arith.addf %118, %120 : vector<8x128xf32>
    %122 = arith.mulf %90, %116 : vector<8x1xf32>
    %123 = arith.addf %83, %122 : vector<8x1xf32>
    %124 = arith.addf %123, %116 : vector<8x1xf32>
    %cst_36 = arith.constant 9.900000e-01 : f32
    %125 = vector.broadcast %cst_36 : f32 to vector<8x1xf32>
    %126 = arith.cmpf ogt, %124, %125 : vector<8x1xf32>
    %127 = arith.extui %126 : vector<8x1xi1> to vector<8x1xi32>
    %128 = arith.sitofp %127 : vector<8x1xi32> to vector<8x1xf32>
    %129 = arith.mulf %90, %128 : vector<8x1xf32>
    %130 = arith.subf %90, %129 : vector<8x1xf32>
    %131 = arith.addf %91, %130 : vector<8x1xf32>
    %cst_37 = arith.constant 1.000000e+00 : f32
    %132 = vector.broadcast %cst_37 : f32 to vector<8x1xf32>
    %133 = arith.subf %132, %123 : vector<8x1xf32>
    %134 = arith.mulf %129, %133 : vector<8x1xf32>
    %135 = arith.addf %122, %134 : vector<8x1xf32>
    %136 = vector.broadcast %135 : vector<8x1xf32> to vector<8x128xf32>
    %137 = arith.mulf %136, %121 : vector<8x128xf32>
    %138 = arith.addf %98, %137 : vector<8x128xf32>
    %139 = arith.addf %99, %122 : vector<8x1xf32>
    %cst_38 = arith.constant 1.000000e+00 : f32
    %140 = vector.broadcast %cst_38 : f32 to vector<8x1xf32>
    %141 = arith.subf %140, %123 : vector<8x1xf32>
    %142 = arith.mulf %130, %141 : vector<8x1xf32>
    %143 = vector.broadcast %142 : vector<8x1xf32> to vector<8x128xf32>
    %144 = arith.mulf %143, %121 : vector<8x128xf32>
    %145 = arith.addf %138, %144 : vector<8x128xf32>
    %c0_39 = arith.constant 0 : index
    %c0_40 = arith.constant 0 : index
    %146 = vector.load %arg8[%c0_39, %c0_40] : memref<8x128xf32, #tpu.memory_space<vmem>>, vector<8x128xf32>
    tpu.vector_store %arg8[%c0_39, %c0_40], %145 {strides = array<i32>} : memref<8x128xf32, #tpu.memory_space<vmem>>, vector<8x128xf32>,
    %cst_41 = arith.constant -0.00999999977 : f32
    %147 = vector.broadcast %cst_41 : f32 to vector<1x1xf32>
    %148 = vector.shape_cast %139 : vector<8x1xf32> to vector<1x8x1xf32>
    %cst_42 = arith.constant dense<0.000000e+00> : vector<1xf32>
    %149 = vector.multi_reduction <add>, %148, %cst_42 [1, 2] : vector<1x8x1xf32> to vector<1xf32>
    %150 = vector.shape_cast %149 : vector<1xf32> to vector<1x1x1xf32>
    %151 = vector.extract %150[0, 0, 0] : f32 from vector<1x1x1xf32>
    %cst_43 = arith.constant 8.000000e+00 : f32
    %152 = arith.divf %151, %cst_43 : f32
    %153 = vector.broadcast %152 : f32 to vector<1x1xf32>
    %154 = arith.mulf %147, %153 : vector<1x1xf32>
    %c0_44 = arith.constant 0 : index
    %c0_45 = arith.constant 0 : index
    %155 = vector.load %arg9[%c0_44, %c0_45] : memref<1x1xf32, #tpu.memory_space<vmem>>, vector<1x1xf32>
    tpu.vector_store %arg9[%c0_44, %c0_45], %154 {strides = array<i32>} : memref<1x1xf32, #tpu.memory_space<vmem>>, vector<1x1xf32>,
    %cst_46 = arith.constant 1.000000e+00 : f32
    %156 = vector.broadcast %cst_46 : f32 to vector<8x1xf32>
    %157 = arith.addf %131, %156 : vector<8x1xf32>
    %c0_47 = arith.constant 0 : index
    %c0_48 = arith.constant 0 : index
    %158 = vector.load %arg10[%c0_47, %c0_48] : memref<8x1xf32, #tpu.memory_space<vmem>>, vector<8x1xf32>
    tpu.vector_store %arg10[%c0_47, %c0_48], %157 {strides = array<i32>} : memref<8x1xf32, #tpu.memory_space<vmem>>, vector<8x1xf32>,
    return
  }
}

</mosaic_0001>

<llo_original>
// kernel: tpu_custom_call.1
$region0: #{tpu_custom_call.1}
  #allocation0 [shape = 'u32[]', space=smem, size = 0x4, offset = 0x4, fixed_abs, tag = 'smem constant byte address 0x4 - core index']
  #allocation1 [shape = 'u32[144,128]{1,0:T(1,128)}', space=vmem, size = 0x12000, scoped, tag = 'internal scratch']
  #allocation2 [shape = 'f32[1,1]{1,0:T(1,128)S(1)}', space=vmem, size = 0x200, scoped, tag = 'scoped memory for tpu_custom_call.1']
  %s0 = inlined_call_operand.hbm [shape: f32[8,16], index: 0, kind: input, shape index: {}]
  %s1 = inlined_call_operand.hbm [shape: f32[16,128], index: 1, kind: input, shape index: {}]
  %s2 = inlined_call_operand.hbm [shape: f32[128,128], index: 2, kind: input, shape index: {}]
  %s3 = inlined_call_operand.vmem [shape: f32[1,128], index: 3, kind: input, shape index: {}]
  %s4 = inlined_call_operand.vmem [shape: f32[1,128], index: 4, kind: input, shape index: {}]
  %s5 = inlined_call_operand.vmem [shape: f32[1,128], index: 5, kind: input, shape index: {}]
  %s6 = inlined_call_operand.vmem [shape: f32[1,128], index: 6, kind: input, shape index: {}]
  %s7 = inlined_call_operand.<no memory space> [shape: f32[1,1], index: 7, kind: input, shape index: {}]
  %s8 = inlined_call_operand.hbm [shape: f32[8,128], index: 8, kind: output, shape index: {0}]
  %s9 = inlined_call_operand.hbm [shape: f32[1,1], index: 9, kind: output, shape index: {1}]
  %s10 = inlined_call_operand.vmem [shape: f32[8,1], index: 10, kind: output, shape index: {2}]
  %11 = xla_tuple %s8, %s9, %s10
  %s12 = sld [smem:[#allocation0]]
  $region77: #{tpu_custom_call.1} parent=0
    _
  %s14 = ssub.s32 1, %s12
  %s15 = scalar_select 0, %s14, %s12
  %v16 = vstv %s7
  %17 = vst [vmem:[#allocation2] sm:$0x1] %v16
  $region1: #{tpu_custom_call.1} parent=0
    #allocation3 [shape = 'u8[4096]{0}', space=vmem, size = 0x1000, scoped, tag = 'input window, operand 0, single buffered']
    #allocation4 [shape = 's32[1]{0}', space=sflag, size = 0x4, scoped, tag = 'scoped memory for tpu_custom_call.1']
    #allocation5 [shape = 's32[1]{0}', space=sflag, size = 0x4, scoped, tag = 'scoped memory for tpu_custom_call.1']
    #allocation6 [shape = 'u8[8192]{0}', space=vmem, size = 0x2000, scoped, tag = 'input window, operand 1, single buffered']
    #allocation7 [shape = 's32[1]{0}', space=sflag, size = 0x4, scoped, tag = 'scoped memory for tpu_custom_call.1']
    #allocation8 [shape = 'u8[65536]{0}', space=vmem, size = 0x10000, scoped, tag = 'input window, operand 2, single buffered']
    #allocation9 [shape = 'u8[4096]{0}', space=vmem, size = 0x1000, scoped, tag = 'output window, operand 0, single buffered']
    #allocation10 [shape = 'u8[512]{0}', space=vmem, size = 0x400, scoped, tag = 'output window, operand 1, single buffered']
    #allocation11 [shape = 's32[1]{0}', space=sflag, size = 0x4, scoped, tag = 'scoped memory for tpu_custom_call.1']
    %18 = vsyncpa [#allocation4], 0
    %19 = vsyncpa [#allocation7], 0
    %20 = vsyncpa [#allocation5], 0
    %21 = vsyncpa [#allocation11], 0
    // Predicated region
    $region2: #{tpu_custom_call.1} parent=1 // pred_check
      _
    $region3: #{tpu_custom_call.1} parent=1 // pred_check_branch
      %23 = sbr.rel (0) target = $region5
    $region4: #{tpu_custom_call.1} parent=1 // pred_region
      %s25 = ssub.s32 128, 128
      %26 = vsyncadd [#allocation4], %s25
      %s28 = sshll.u32 [#allocation3], 4
      %s29 = int_to_ptr.vmem [resolvable:$true] %s28
      %31 = dma.hbm_to_vmem [thread:$0]  %s0, 128, %s29, [#allocation4]
    $region5: #{tpu_custom_call.1} parent=1 // pred_fallthru
      _
    // Predicated region
    $region6: #{tpu_custom_call.1} parent=1 // pred_check
      _
    $region7: #{tpu_custom_call.1} parent=1 // pred_check_branch
      %33 = sbr.rel (0) target = $region9
    $region8: #{tpu_custom_call.1} parent=1 // pred_region
      %s35 = ssub.s32 256, 256
      %36 = vsyncadd [#allocation7], %s35
      %s37 = sshll.u32 [#allocation6], 4
      %s38 = int_to_ptr.vmem [resolvable:$true] %s37
      %43 = dma.hbm_to_vmem [thread:$0]  %s1, 256, %s38, [#allocation7], 128, 128, 8
    $region9: #{tpu_custom_call.1} parent=1 // pred_fallthru
      _
    // Predicated region
    $region10: #{tpu_custom_call.1} parent=1 // pred_check
      _
    $region11: #{tpu_custom_call.1} parent=1 // pred_check_branch
      %45 = sbr.rel (0) target = $region13
    $region12: #{tpu_custom_call.1} parent=1 // pred_region
      %s47 = ssub.s32 2048, 2048
      %48 = vsyncadd [#allocation7], %s47
      %s49 = sshll.u32 [#allocation8], 4
      %s50 = int_to_ptr.vmem [resolvable:$true] %s49
      %55 = dma.hbm_to_vmem [thread:$0]  %s2, 2048, %s50, [#allocation7], 128, 128, 8
    $region13: #{tpu_custom_call.1} parent=1 // pred_fallthru
      _
    // Predicated region
    $region14: #{tpu_custom_call.1} parent=1 // pred_check
      _
    $region15: #{tpu_custom_call.1} parent=1 // pred_check_branch
      %57 = sbr.rel (0) target = $region17
    $region16: #{tpu_custom_call.1} parent=1 // pred_region
      _
    $region17: #{tpu_custom_call.1} parent=1 // pred_fallthru
      _
    // Predicated region
    $region18: #{tpu_custom_call.1} parent=1 // pred_check
      _
    $region19: #{tpu_custom_call.1} parent=1 // pred_check_branch
      %59 = sbr.rel (0) target = $region21
    $region20: #{tpu_custom_call.1} parent=1 // pred_region
      _
    $region21: #{tpu_custom_call.1} parent=1 // pred_fallthru
      _
    // Predicated region
    $region22: #{tpu_custom_call.1} parent=1 // pred_check
      _
    $region23: #{tpu_custom_call.1} parent=1 // pred_check_branch
      %61 = sbr.rel (0) target = $region25
    $region24: #{tpu_custom_call.1} parent=1 // pred_region
      _
    $region25: #{tpu_custom_call.1} parent=1 // pred_fallthru
      _
    // Predicated region
    $region26: #{tpu_custom_call.1} parent=1 // pred_check
      _
    $region27: #{tpu_custom_call.1} parent=1 // pred_check_branch
      %63 = sbr.rel (0) target = $region29
    $region28: #{tpu_custom_call.1} parent=1 // pred_region
      _
    $region29: #{tpu_custom_call.1} parent=1 // pred_fallthru
      _
    // Predicated region
    $region30: #{tpu_custom_call.1} parent=1 // pred_check
      _
    $region31: #{tpu_custom_call.1} parent=1 // pred_check_branch
      %65 = sbr.rel (0) target = $region33
    $region32: #{tpu_custom_call.1} parent=1 // pred_region
      _
    $region33: #{tpu_custom_call.1} parent=1 // pred_fallthru
      _
    // Predicated region
    $region34: #{tpu_custom_call.1} parent=1 // pred_check
      _
    $region35: #{tpu_custom_call.1} parent=1 // pred_check_branch
      %67 = sbr.rel (0) target = $region37
    $region36: #{tpu_custom_call.1} parent=1 // pred_region
      %68 = dma.done [#allocation4], 128
    $region37: #{tpu_custom_call.1} parent=1 // pred_fallthru
      _
    // Predicated region
    $region38: #{tpu_custom_call.1} parent=1 // pred_check
      _
    $region39: #{tpu_custom_call.1} parent=1 // pred_check_branch
      %70 = sbr.rel (0) target = $region41
    $region40: #{tpu_custom_call.1} parent=1 // pred_region
      %71 = dma.done [#allocation7], 256
    $region41: #{tpu_custom_call.1} parent=1 // pred_fallthru
      _
    // Predicated region
    $region42: #{tpu_custom_call.1} parent=1 // pred_check
      _
    $region43: #{tpu_custom_call.1} parent=1 // pred_check_branch
      %73 = sbr.rel (0) target = $region45
    $region44: #{tpu_custom_call.1} parent=1 // pred_region
      %74 = dma.done [#allocation7], 2048
    $region45: #{tpu_custom_call.1} parent=1 // pred_fallthru
      _
    %v75 = vld [vmem:[#allocation3] sm:$0xff]
    %v76 = vld [vmem:[#allocation8] sm:$0xff]
    %v77 = vld [vmem:[#allocation8 + $0x8] sm:$0xff]
    %v78 = vld [vmem:[#allocation8 + $0x10] sm:$0xff]
    %v79 = vld [vmem:[#allocation8 + $0x18] sm:$0xff]
    %v80 = vld [vmem:[#allocation8 + $0x20] sm:$0xff]
    %v81 = vld [vmem:[#allocation8 + $0x28] sm:$0xff]
    %v82 = vld [vmem:[#allocation8 + $0x30] sm:$0xff]
    %v83 = vld [vmem:[#allocation8 + $0x38] sm:$0xff]
    %v84 = vld [vmem:[#allocation8 + $0x40] sm:$0xff]
    %v85 = vld [vmem:[#allocation8 + $0x48] sm:$0xff]
    %v86 = vld [vmem:[#allocation8 + $0x50] sm:$0xff]
    %v87 = vld [vmem:[#allocation8 + $0x58] sm:$0xff]
    %v88 = vld [vmem:[#allocation8 + $0x60] sm:$0xff]
    %v89 = vld [vmem:[#allocation8 + $0x68] sm:$0xff]
    %v90 = vld [vmem:[#allocation8 + $0x70] sm:$0xff]
    %v91 = vld [vmem:[#allocation8 + $0x78] sm:$0xff]
    %v92 = vld [vmem:[%s4] sm:$0x1]
    %v93 = vsub.f32 1.0, %v92
    %v94 = vld [vmem:[%s5] sm:$0x1]
    %v95 = vld [vmem:[%s6] sm:$0x1]
    %v96 = vld [vmem:[#allocation2] sm:$0x1]
    %v97 = vld [vmem:[#allocation6] sm:$0xff]
    %v98 = vld [vmem:[#allocation6 + $0x8] sm:$0xff]
    %v99 = vld [vmem:[%s3] sm:$0x1]
    %v101 = vlaneseq
    %v102 = vshrl.u32 %v101, 7
    %v103 = vsub.s32 0, %v102
    %v104 = vrot.slane %v99, %v103
    %vm106 = vcmask 130048
    %v108 = vsel %vm106, %v75, 0
    %110 = vmatprep.subr.mxu0 0.0
    %111 = vmatpush1.msra.mxu0 %v97
    %112 = vmatprep.subr.mxu0 0.0
    %113 = vmatpush1.msra.mxu0 %v98
    %114 = vmatprep.subr.mxu0 0.0
    %115 = vmatpush1.msra.mxu0 0.0
    %116 = vmatprep.subr.mxu0 0.0
    %117 = vmatpush1.msra.mxu0 0.0
    %118 = vmatprep.subr.mxu0 0.0
    %119 = vmatpush1.msra.mxu0 0.0
    %120 = vmatprep.subr.mxu0 0.0
    %121 = vmatpush1.msra.mxu0 0.0
    %122 = vmatprep.subr.mxu0 0.0
    %123 = vmatpush1.msra.mxu0 0.0
    %124 = vmatprep.subr.mxu0 0.0
    %125 = vmatpush1.msra.mxu0 0.0
    %126 = vmatprep.subr.mxu0 0.0
    %127 = vmatpush1.msra.mxu0 0.0
    %128 = vmatprep.subr.mxu0 0.0
    %129 = vmatpush1.msra.mxu0 0.0
    %130 = vmatprep.subr.mxu0 0.0
    %131 = vmatpush1.msra.mxu0 0.0
    %132 = vmatprep.subr.mxu0 0.0
    %133 = vmatpush1.msra.mxu0 0.0
    %134 = vmatprep.subr.mxu0 0.0
    %135 = vmatpush1.msra.mxu0 0.0
    %136 = vmatprep.subr.mxu0 0.0
    %137 = vmatpush1.msra.mxu0 0.0
    %138 = vmatprep.subr.mxu0 0.0
    %139 = vmatpush1.msra.mxu0 0.0
    %140 = vmatprep.subr.mxu0 0.0
    %141 = vmatpush1.msra.mxu0 0.0
    %142 = vmatprep.subr.mxu0 0.0
    %143 = vmatpush1.msra.mxu0 0.0
    %144 = vmatprep.subr.mxu0 0.0
    %145 = vmatpush1.msra.mxu0 0.0
    %146 = vmatprep.subr.mxu0 0.0
    %147 = vmatpush1.msra.mxu0 0.0
    %148 = vmatprep.subr.mxu0 0.0
    %149 = vmatpush1.msra.mxu0 0.0
    %150 = vmatprep.subr.mxu0 0.0
    %151 = vmatpush1.msra.mxu0 0.0
    %152 = vmatprep.subr.mxu0 0.0
    %153 = vmatpush1.msra.mxu0 0.0
    %154 = vmatprep.subr.mxu0 0.0
    %155 = vmatpush1.msra.mxu0 0.0
    %156 = vmatprep.subr.mxu0 0.0
    %157 = vmatpush1.msra.mxu0 0.0
    %158 = vmatprep.subr.mxu0 0.0
    %159 = vmatpush1.msra.mxu0 0.0
    %160 = vmatprep.subr.mxu0 0.0
    %161 = vmatpush1.msra.mxu0 0.0
    %162 = vmatprep.subr.mxu0 0.0
    %163 = vmatpush1.msra.mxu0 0.0
    %164 = vmatprep.subr.mxu0 0.0
    %165 = vmatpush1.msra.mxu0 0.0
    %166 = vmatprep.subr.mxu0 0.0
    %167 = vmatpush1.msra.mxu0 0.0
    %168 = vmatprep.subr.mxu0 0.0
    %169 = vmatpush1.msra.mxu0 0.0
    %170 = vmatprep.subr.mxu0 0.0
    %171 = vmatpush1.msra.mxu0 0.0
    %172 = vmatprep.subr.mxu0 0.0
    %173 = vmatpush1.msra.mxu0 0.0
    %174 = vmatprep.mubr.f32.mxu0 0.0
    %175 = vmatmul.mubr.f32.gmra.mrb[0].mxu0 %v108
    %v176 = vpop.f32.mrb[0].mxu0
    %v177 = vadd.f32 %v104, %v176
    %v178 = vpop.f32.mrb[0].mxu0
    %179 = vdwg.mxu0
    // While loop
    $region46: #{tpu_custom_call.1} parent=1 // loop_pre_header
      _
    $region47: #{tpu_custom_call.1} parent=1 // loop_header
      %s181 = sphi 0, %s205
      %v182 = vphi 0.0, %v643
      %v183 = vphi 0.0, %v645
      %v184 = vphi 1.0, %v651
      %v185 = vphi 0.0, %v662
      %v186 = vphi 0.0, %v663
      %v187 = vphi 0.0, %v652
      %p188 = scmp.lt.s32.totalorder %s181, 4
      %vm189 = vcmask 7168
      %v190 = vsel %vm189, %v184, -inf
      %191 = vmax.xlane.f32.xlu0 %v190
      %v192 = vpop.xlane.xlu0 %191
      %v193 = vrot.slane %v192, 4
      %v194 = vmax.f32 %v192, %v193
      %v195 = vrot.slane %v194, 2
      %v196 = vmax.f32 %v194, %v195
      %v197 = vrot.slane %v196, 1
      %v198 = vmax.f32 %v196, %v197
      %s199 = vtos %v198
      %p200 = scmp.gt.f32.partialorder %s199, 0.5
      %p201 = pnand %p188, %p200
      %p202 = pneg %p201
    $region48: #{tpu_custom_call.1} parent=1 // loop_header_branch
      %204 = sbr.rel (%p201) target = $region52
    $region49: #{tpu_custom_call.1} parent=1 // loop_body
      %s205 = sadd.s32 %s181, 1
      %206 = vmatprep.subr.mxu0 0.0
      %207 = vmatpush1.msra.mxu0 %v76
      %208 = vmatprep.subr.mxu0 0.0
      %209 = vmatpush1.msra.mxu0 %v77
      %210 = vmatprep.subr.mxu0 0.0
      %211 = vmatpush1.msra.mxu0 %v78
      %212 = vmatprep.subr.mxu0 0.0
      %213 = vmatpush1.msra.mxu0 %v79
      %214 = vmatprep.subr.mxu0 0.0
      %215 = vmatpush1.msra.mxu0 %v80
      %216 = vmatprep.subr.mxu0 0.0
      %217 = vmatpush1.msra.mxu0 %v81
      %218 = vmatprep.subr.mxu0 0.0
      %219 = vmatpush1.msra.mxu0 %v82
      %220 = vmatprep.subr.mxu0 0.0
      %221 = vmatpush1.msra.mxu0 %v83
      %222 = vmatprep.subr.mxu0 0.0
      %223 = vmatpush1.msra.mxu0 %v84
      %224 = vmatprep.subr.mxu0 0.0
      %225 = vmatpush1.msra.mxu0 %v85
      %226 = vmatprep.subr.mxu0 0.0
      %227 = vmatpush1.msra.mxu0 %v86
      %228 = vmatprep.subr.mxu0 0.0
      %229 = vmatpush1.msra.mxu0 %v87
      %230 = vmatprep.subr.mxu0 0.0
      %231 = vmatpush1.msra.mxu0 %v88
      %232 = vmatprep.subr.mxu0 0.0
      %233 = vmatpush1.msra.mxu0 %v89
      %234 = vmatprep.subr.mxu0 0.0
      %235 = vmatpush1.msra.mxu0 %v90
      %236 = vmatprep.subr.mxu0 0.0
      %237 = vmatpush1.msra.mxu0 %v91
      %238 = vmatprep.subr.mxu0 0.0
      %239 = vmatpush1.msra.mxu0 0.0
      %240 = vmatprep.subr.mxu0 0.0
      %241 = vmatpush1.msra.mxu0 0.0
      %242 = vmatprep.subr.mxu0 0.0
      %243 = vmatpush1.msra.mxu0 0.0
      %244 = vmatprep.subr.mxu0 0.0
      %245 = vmatpush1.msra.mxu0 0.0
      %246 = vmatprep.subr.mxu0 0.0
      %247 = vmatpush1.msra.mxu0 0.0
      %248 = vmatprep.subr.mxu0 0.0
      %249 = vmatpush1.msra.mxu0 0.0
      %250 = vmatprep.subr.mxu0 0.0
      %251 = vmatpush1.msra.mxu0 0.0
      %252 = vmatprep.subr.mxu0 0.0
      %253 = vmatpush1.msra.mxu0 0.0
      %254 = vmatprep.subr.mxu0 0.0
      %255 = vmatpush1.msra.mxu0 0.0
      %256 = vmatprep.subr.mxu0 0.0
      %257 = vmatpush1.msra.mxu0 0.0
      %258 = vmatprep.subr.mxu0 0.0
      %259 = vmatpush1.msra.mxu0 0.0
      %260 = vmatprep.subr.mxu0 0.0
      %261 = vmatpush1.msra.mxu0 0.0
      %262 = vmatprep.subr.mxu0 0.0
      %263 = vmatpush1.msra.mxu0 0.0
      %264 = vmatprep.subr.mxu0 0.0
      %265 = vmatpush1.msra.mxu0 0.0
      %266 = vmatprep.subr.mxu0 0.0
      %267 = vmatpush1.msra.mxu0 0.0
      %268 = vmatprep.subr.mxu0 0.0
      %269 = vmatpush1.msra.mxu0 0.0
      %270 = vmatprep.mubr.f32.mxu0 0.0
      %271 = vmatmul.mubr.f32.gmra.mrb[0].mxu0 %v182
      %v272 = vpop.f32.mrb[0].mxu0
      %v273 = vadd.f32 0.0, %v272
      %v274 = vpop.f32.mrb[0].mxu0
      %275 = vdwg.mxu0
      %v276 = vadd.f32 %v177, %v273
      %v277 = vtanh.pop %v276
      %v279 = vlaneseq
      %v280 = vshrl.u32 %v279, 7
      %v281 = vsub.s32 0, %v280
      %v282 = vrot.slane %v95, %v281
      %v284 = vmul.f32 %v276, %v282
      %v286 = vlaneseq
      %v287 = vshrl.u32 %v286, 7
      %v288 = vsub.s32 0, %v287
      %v289 = vrot.slane %v94, %v288
      %v291 = vmul.f32 %v277, %v289
      %v292 = vadd.f32 %v284, %v291
      %293 = vadd.xlane.f32.xlu0 %v292
      %v294 = vpop.xlane.xlu0 %293
      %v296 = vlaneseq
      %v297 = vshrl.u32 %v296, 7
      %v298 = vsub.s32 0, %v297
      %v299 = vrot.slane %v96, %v298
      %v301 = vadd.f32 %v294, %v299
      %v302 = vxor.u32 %v301, 2147483648
      %v303 = vmul.f32 %v302, 1.442695
      %v304 = vpow.pop %v303
      %v305 = vadd.f32 %v304, 1.0
      %v306 = vrcp.pop %v305
      %v307 = vmul.f32 1.0, %v306
      %v309 = vlaneseq
      %v310 = vshrl.u32 %v309, 7
      %v311 = vsub.s32 0, %v310
      %v312 = vrot.slane %v93, %v311
      %v314 = vmul.f32 %v312, %v182
      %v316 = vlaneseq
      %v317 = vshrl.u32 %v316, 7
      %v318 = vsub.s32 0, %v317
      %v319 = vrot.slane %v92, %v318
      %v321 = vmul.f32 %v319, %v277
      %v322 = vadd.f32 %v314, %v321
      %v323 = vmul.f32 %v184, %v307
      %v324 = vadd.f32 %v183, %v323
      %v325 = vadd.f32 %v324, %v307
      %vm326 = vcmp.gt.f32.partialorder %v325, 0.99
      %v327 = vsel %vm326, 1, 0
      %v328 = vcvt.s32.f32 %v327
      %v329 = vmul.f32 %v184, %v328
      %v330 = vsub.f32 %v184, %v329
      %v331 = vadd.f32 %v187, %v330
      %v332 = vsub.f32 1.0, %v324
      %v333 = vmul.f32 %v329, %v332
      %v334 = vadd.f32 %v323, %v333
      %336 = vset.pattern.permute.xlu0 0
      %337 = vperm.xlu0 %336, %v334
      %v338 = vpop.permute.xlu0 %337
      %v340 = vmul.f32 %v338, %v322
      %v341 = vadd.f32 %v185, %v340
      %v342 = vadd.f32 %v186, %v323
      %343 = vmatprep.subr.mxu0 0.0
      %344 = vmatpush1.msra.mxu0 %v76
      %345 = vmatprep.subr.mxu0 0.0
      %346 = vmatpush1.msra.mxu0 %v77
      %347 = vmatprep.subr.mxu0 0.0
      %348 = vmatpush1.msra.mxu0 %v78
      %349 = vmatprep.subr.mxu0 0.0
      %350 = vmatpush1.msra.mxu0 %v79
      %351 = vmatprep.subr.mxu0 0.0
      %352 = vmatpush1.msra.mxu0 %v80
      %353 = vmatprep.subr.mxu0 0.0
      %354 = vmatpush1.msra.mxu0 %v81
      %355 = vmatprep.subr.mxu0 0.0
      %356 = vmatpush1.msra.mxu0 %v82
      %357 = vmatprep.subr.mxu0 0.0
      %358 = vmatpush1.msra.mxu0 %v83
      %359 = vmatprep.subr.mxu0 0.0
      %360 = vmatpush1.msra.mxu0 %v84
      %361 = vmatprep.subr.mxu0 0.0
      %362 = vmatpush1.msra.mxu0 %v85
      %363 = vmatprep.subr.mxu0 0.0
      %364 = vmatpush1.msra.mxu0 %v86
      %365 = vmatprep.subr.mxu0 0.0
      %366 = vmatpush1.msra.mxu0 %v87
      %367 = vmatprep.subr.mxu0 0.0
      %368 = vmatpush1.msra.mxu0 %v88
      %369 = vmatprep.subr.mxu0 0.0
      %370 = vmatpush1.msra.mxu0 %v89
      %371 = vmatprep.subr.mxu0 0.0
      %372 = vmatpush1.msra.mxu0 %v90
      %373 = vmatprep.subr.mxu0 0.0
      %374 = vmatpush1.msra.mxu0 %v91
      %375 = vmatprep.subr.mxu0 0.0
      %376 = vmatpush1.msra.mxu0 0.0
      %377 = vmatprep.subr.mxu0 0.0
      %378 = vmatpush1.msra.mxu0 0.0
      %379 = vmatprep.subr.mxu0 0.0
      %380 = vmatpush1.msra.mxu0 0.0
      %381 = vmatprep.subr.mxu0 0.0
      %382 = vmatpush1.msra.mxu0 0.0
      %383 = vmatprep.subr.mxu0 0.0
      %384 = vmatpush1.msra.mxu0 0.0
      %385 = vmatprep.subr.mxu0 0.0
      %386 = vmatpush1.msra.mxu0 0.0
      %387 = vmatprep.subr.mxu0 0.0
      %388 = vmatpush1.msra.mxu0 0.0
      %389 = vmatprep.subr.mxu0 0.0
      %390 = vmatpush1.msra.mxu0 0.0
      %391 = vmatprep.subr.mxu0 0.0
      %392 = vmatpush1.msra.mxu0 0.0
      %393 = vmatprep.subr.mxu0 0.0
      %394 = vmatpush1.msra.mxu0 0.0
      %395 = vmatprep.subr.mxu0 0.0
      %396 = vmatpush1.msra.mxu0 0.0
      %397 = vmatprep.subr.mxu0 0.0
      %398 = vmatpush1.msra.mxu0 0.0
      %399 = vmatprep.subr.mxu0 0.0
      %400 = vmatpush1.msra.mxu0 0.0
      %401 = vmatprep.subr.mxu0 0.0
      %402 = vmatpush1.msra.mxu0 0.0
      %403 = vmatprep.subr.mxu0 0.0
      %404 = vmatpush1.msra.mxu0 0.0
      %405 = vmatprep.subr.mxu0 0.0
      %406 = vmatpush1.msra.mxu0 0.0
      %407 = vmatprep.mubr.f32.mxu0 0.0
      %408 = vmatmul.mubr.f32.gmra.mrb[0].mxu0 %v322
      %v409 = vpop.f32.mrb[0].mxu0
      %v410 = vadd.f32 0.0, %v409
      %v411 = vpop.f32.mrb[0].mxu0
      %412 = vdwg.mxu0
      %v413 = vadd.f32 %v177, %v410
      %v414 = vtanh.pop %v413
      %v415 = vmul.f32 %v413, %v282
      %v416 = vmul.f32 %v414, %v289
      %v417 = vadd.f32 %v415, %v416
      %418 = vadd.xlane.f32.xlu0 %v417
      %v419 = vpop.xlane.xlu0 %418
      %v420 = vadd.f32 %v419, %v299
      %v421 = vxor.u32 %v420, 2147483648
      %v422 = vmul.f32 %v421, 1.442695
      %v423 = vpow.pop %v422
      %v424 = vadd.f32 %v423, 1.0
      %v425 = vrcp.pop %v424
      %v426 = vmul.f32 1.0, %v425
      %v427 = vmul.f32 %v312, %v322
      %v428 = vmul.f32 %v319, %v414
      %v429 = vadd.f32 %v427, %v428
      %v430 = vmul.f32 %v330, %v426
      %v431 = vadd.f32 %v324, %v430
      %v432 = vadd.f32 %v431, %v426
      %vm433 = vcmp.gt.f32.partialorder %v432, 0.99
      %v434 = vsel %vm433, 1, 0
      %v435 = vcvt.s32.f32 %v434
      %v436 = vmul.f32 %v330, %v435
      %v437 = vsub.f32 %v330, %v436
      %v438 = vadd.f32 %v331, %v437
      %v439 = vsub.f32 1.0, %v431
      %v440 = vmul.f32 %v436, %v439
      %v441 = vadd.f32 %v430, %v440
      %443 = vset.pattern.permute.xlu0 0
      %444 = vperm.xlu0 %443, %v441
      %v445 = vpop.permute.xlu0 %444
      %v447 = vmul.f32 %v445, %v429
      %v448 = vadd.f32 %v341, %v447
      %v449 = vadd.f32 %v342, %v430
      %450 = vmatprep.subr.mxu0 0.0
      %451 = vmatpush1.msra.mxu0 %v76
      %452 = vmatprep.subr.mxu0 0.0
      %453 = vmatpush1.msra.mxu0 %v77
      %454 = vmatprep.subr.mxu0 0.0
      %455 = vmatpush1.msra.mxu0 %v78
      %456 = vmatprep.subr.mxu0 0.0
      %457 = vmatpush1.msra.mxu0 %v79
      %458 = vmatprep.subr.mxu0 0.0
      %459 = vmatpush1.msra.mxu0 %v80
      %460 = vmatprep.subr.mxu0 0.0
      %461 = vmatpush1.msra.mxu0 %v81
      %462 = vmatprep.subr.mxu0 0.0
      %463 = vmatpush1.msra.mxu0 %v82
      %464 = vmatprep.subr.mxu0 0.0
      %465 = vmatpush1.msra.mxu0 %v83
      %466 = vmatprep.subr.mxu0 0.0
      %467 = vmatpush1.msra.mxu0 %v84
      %468 = vmatprep.subr.mxu0 0.0
      %469 = vmatpush1.msra.mxu0 %v85
      %470 = vmatprep.subr.mxu0 0.0
      %471 = vmatpush1.msra.mxu0 %v86
      %472 = vmatprep.subr.mxu0 0.0
      %473 = vmatpush1.msra.mxu0 %v87
      %474 = vmatprep.subr.mxu0 0.0
      %475 = vmatpush1.msra.mxu0 %v88
      %476 = vmatprep.subr.mxu0 0.0
      %477 = vmatpush1.msra.mxu0 %v89
      %478 = vmatprep.subr.mxu0 0.0
      %479 = vmatpush1.msra.mxu0 %v90
      %480 = vmatprep.subr.mxu0 0.0
      %481 = vmatpush1.msra.mxu0 %v91
      %482 = vmatprep.subr.mxu0 0.0
      %483 = vmatpush1.msra.mxu0 0.0
      %484 = vmatprep.subr.mxu0 0.0
      %485 = vmatpush1.msra.mxu0 0.0
      %486 = vmatprep.subr.mxu0 0.0
      %487 = vmatpush1.msra.mxu0 0.0
      %488 = vmatprep.subr.mxu0 0.0
      %489 = vmatpush1.msra.mxu0 0.0
      %490 = vmatprep.subr.mxu0 0.0
      %491 = vmatpush1.msra.mxu0 0.0
      %492 = vmatprep.subr.mxu0 0.0
      %493 = vmatpush1.msra.mxu0 0.0
      %494 = vmatprep.subr.mxu0 0.0
      %495 = vmatpush1.msra.mxu0 0.0
      %496 = vmatprep.subr.mxu0 0.0
      %497 = vmatpush1.msra.mxu0 0.0
      %498 = vmatprep.subr.mxu0 0.0
      %499 = vmatpush1.msra.mxu0 0.0
      %500 = vmatprep.subr.mxu0 0.0
      %501 = vmatpush1.msra.mxu0 0.0
      %502 = vmatprep.subr.mxu0 0.0
      %503 = vmatpush1.msra.mxu0 0.0
      %504 = vmatprep.subr.mxu0 0.0
      %505 = vmatpush1.msra.mxu0 0.0
      %506 = vmatprep.subr.mxu0 0.0
      %507 = vmatpush1.msra.mxu0 0.0
      %508 = vmatprep.subr.mxu0 0.0
      %509 = vmatpush1.msra.mxu0 0.0
      %510 = vmatprep.subr.mxu0 0.0
      %511 = vmatpush1.msra.mxu0 0.0
      %512 = vmatprep.subr.mxu0 0.0
      %513 = vmatpush1.msra.mxu0 0.0
      %514 = vmatprep.mubr.f32.mxu0 0.0
      %515 = vmatmul.mubr.f32.gmra.mrb[0].mxu0 %v429
      %v516 = vpop.f32.mrb[0].mxu0
      %v517 = vadd.f32 0.0, %v516
      %v518 = vpop.f32.mrb[0].mxu0
      %519 = vdwg.mxu0
      %v520 = vadd.f32 %v177, %v517
      %v521 = vtanh.pop %v520
      %v522 = vmul.f32 %v520, %v282
      %v523 = vmul.f32 %v521, %v289
      %v524 = vadd.f32 %v522, %v523
      %525 = vadd.xlane.f32.xlu0 %v524
      %v526 = vpop.xlane.xlu0 %525
      %v527 = vadd.f32 %v526, %v299
      %v528 = vxor.u32 %v527, 2147483648
      %v529 = vmul.f32 %v528, 1.442695
      %v530 = vpow.pop %v529
      %v531 = vadd.f32 %v530, 1.0
      %v532 = vrcp.pop %v531
      %v533 = vmul.f32 1.0, %v532
      %v534 = vmul.f32 %v312, %v429
      %v535 = vmul.f32 %v319, %v521
      %v536 = vadd.f32 %v534, %v535
      %v537 = vmul.f32 %v437, %v533
      %v538 = vadd.f32 %v431, %v537
      %v539 = vadd.f32 %v538, %v533
      %vm540 = vcmp.gt.f32.partialorder %v539, 0.99
      %v541 = vsel %vm540, 1, 0
      %v542 = vcvt.s32.f32 %v541
      %v543 = vmul.f32 %v437, %v542
      %v544 = vsub.f32 %v437, %v543
      %v545 = vadd.f32 %v438, %v544
      %v546 = vsub.f32 1.0, %v538
      %v547 = vmul.f32 %v543, %v546
      %v548 = vadd.f32 %v537, %v547
      %550 = vset.pattern.permute.xlu0 0
      %551 = vperm.xlu0 %550, %v548
      %v552 = vpop.permute.xlu0 %551
      %v554 = vmul.f32 %v552, %v536
      %v555 = vadd.f32 %v448, %v554
      %v556 = vadd.f32 %v449, %v537
      %557 = vmatprep.subr.mxu0 0.0
      %558 = vmatpush1.msra.mxu0 %v76
      %559 = vmatprep.subr.mxu0 0.0
      %560 = vmatpush1.msra.mxu0 %v77
      %561 = vmatprep.subr.mxu0 0.0
      %562 = vmatpush1.msra.mxu0 %v78
      %563 = vmatprep.subr.mxu0 0.0
      %564 = vmatpush1.msra.mxu0 %v79
      %565 = vmatprep.subr.mxu0 0.0
      %566 = vmatpush1.msra.mxu0 %v80
      %567 = vmatprep.subr.mxu0 0.0
      %568 = vmatpush1.msra.mxu0 %v81
      %569 = vmatprep.subr.mxu0 0.0
      %570 = vmatpush1.msra.mxu0 %v82
      %571 = vmatprep.subr.mxu0 0.0
      %572 = vmatpush1.msra.mxu0 %v83
      %573 = vmatprep.subr.mxu0 0.0
      %574 = vmatpush1.msra.mxu0 %v84
      %575 = vmatprep.subr.mxu0 0.0
      %576 = vmatpush1.msra.mxu0 %v85
      %577 = vmatprep.subr.mxu0 0.0
      %578 = vmatpush1.msra.mxu0 %v86
      %579 = vmatprep.subr.mxu0 0.0
      %580 = vmatpush1.msra.mxu0 %v87
      %581 = vmatprep.subr.mxu0 0.0
      %582 = vmatpush1.msra.mxu0 %v88
      %583 = vmatprep.subr.mxu0 0.0
      %584 = vmatpush1.msra.mxu0 %v89
      %585 = vmatprep.subr.mxu0 0.0
      %586 = vmatpush1.msra.mxu0 %v90
      %587 = vmatprep.subr.mxu0 0.0
      %588 = vmatpush1.msra.mxu0 %v91
      %589 = vmatprep.subr.mxu0 0.0
      %590 = vmatpush1.msra.mxu0 0.0
      %591 = vmatprep.subr.mxu0 0.0
      %592 = vmatpush1.msra.mxu0 0.0
      %593 = vmatprep.subr.mxu0 0.0
      %594 = vmatpush1.msra.mxu0 0.0
      %595 = vmatprep.subr.mxu0 0.0
      %596 = vmatpush1.msra.mxu0 0.0
      %597 = vmatprep.subr.mxu0 0.0
      %598 = vmatpush1.msra.mxu0 0.0
      %599 = vmatprep.subr.mxu0 0.0
      %600 = vmatpush1.msra.mxu0 0.0
      %601 = vmatprep.subr.mxu0 0.0
      %602 = vmatpush1.msra.mxu0 0.0
      %603 = vmatprep.subr.mxu0 0.0
      %604 = vmatpush1.msra.mxu0 0.0
      %605 = vmatprep.subr.mxu0 0.0
      %606 = vmatpush1.msra.mxu0 0.0
      %607 = vmatprep.subr.mxu0 0.0
      %608 = vmatpush1.msra.mxu0 0.0
      %609 = vmatprep.subr.mxu0 0.0
      %610 = vmatpush1.msra.mxu0 0.0
      %611 = vmatprep.subr.mxu0 0.0
      %612 = vmatpush1.msra.mxu0 0.0
      %613 = vmatprep.subr.mxu0 0.0
      %614 = vmatpush1.msra.mxu0 0.0
      %615 = vmatprep.subr.mxu0 0.0
      %616 = vmatpush1.msra.mxu0 0.0
      %617 = vmatprep.subr.mxu0 0.0
      %618 = vmatpush1.msra.mxu0 0.0
      %619 = vmatprep.subr.mxu0 0.0
      %620 = vmatpush1.msra.mxu0 0.0
      %621 = vmatprep.mubr.f32.mxu0 0.0
      %622 = vmatmul.mubr.f32.gmra.mrb[0].mxu0 %v536
      %v623 = vpop.f32.mrb[0].mxu0
      %v624 = vadd.f32 0.0, %v623
      %v625 = vpop.f32.mrb[0].mxu0
      %626 = vdwg.mxu0
      %v627 = vadd.f32 %v177, %v624
      %v628 = vtanh.pop %v627
      %v629 = vmul.f32 %v627, %v282
      %v630 = vmul.f32 %v628, %v289
      %v631 = vadd.f32 %v629, %v630
      %632 = vadd.xlane.f32.xlu0 %v631
      %v633 = vpop.xlane.xlu0 %632
      %v634 = vadd.f32 %v633, %v299
      %v635 = vxor.u32 %v634, 2147483648
      %v636 = vmul.f32 %v635, 1.442695
      %v637 = vpow.pop %v636
      %v638 = vadd.f32 %v637, 1.0
      %v639 = vrcp.pop %v638
      %v640 = vmul.f32 1.0, %v639
      %v641 = vmul.f32 %v312, %v536
      %v642 = vmul.f32 %v319, %v628
      %v643 = vadd.f32 %v641, %v642
      %v644 = vmul.f32 %v544, %v640
      %v645 = vadd.f32 %v538, %v644
      %v646 = vadd.f32 %v645, %v640
      %vm647 = vcmp.gt.f32.partialorder %v646, 0.99
      %v648 = vsel %vm647, 1, 0
      %v649 = vcvt.s32.f32 %v648
      %v650 = vmul.f32 %v544, %v649
      %v651 = vsub.f32 %v544, %v650
      %v652 = vadd.f32 %v545, %v651
      %v653 = vsub.f32 1.0, %v645
      %v654 = vmul.f32 %v650, %v653
      %v655 = vadd.f32 %v644, %v654
      %657 = vset.pattern.permute.xlu0 0
      %658 = vperm.xlu0 %657, %v655
      %v659 = vpop.permute.xlu0 %658
      %v661 = vmul.f32 %v659, %v643
      %v662 = vadd.f32 %v555, %v661
      %v663 = vadd.f32 %v556, %v644
    $region50: #{tpu_custom_call.1} parent=1 // loop_footer
      _
    $region51: #{tpu_custom_call.1} parent=1 // loop_footer_branch
      %180 = sbr.rel target = $region47
    $region52: #{tpu_custom_call.1} parent=1 // loop_exit
      _
    %664 = vmatprep.subr.mxu0 0.0
    %665 = vmatpush1.msra.mxu0 %v76
    %666 = vmatprep.subr.mxu0 0.0
    %667 = vmatpush1.msra.mxu0 %v77
    %668 = vmatprep.subr.mxu0 0.0
    %669 = vmatpush1.msra.mxu0 %v78
    %670 = vmatprep.subr.mxu0 0.0
    %671 = vmatpush1.msra.mxu0 %v79
    %672 = vmatprep.subr.mxu0 0.0
    %673 = vmatpush1.msra.mxu0 %v80
    %674 = vmatprep.subr.mxu0 0.0
    %675 = vmatpush1.msra.mxu0 %v81
    %676 = vmatprep.subr.mxu0 0.0
    %677 = vmatpush1.msra.mxu0 %v82
    %678 = vmatprep.subr.mxu0 0.0
    %679 = vmatpush1.msra.mxu0 %v83
    %680 = vmatprep.subr.mxu0 0.0
    %681 = vmatpush1.msra.mxu0 %v84
    %682 = vmatprep.subr.mxu0 0.0
    %683 = vmatpush1.msra.mxu0 %v85
    %684 = vmatprep.subr.mxu0 0.0
    %685 = vmatpush1.msra.mxu0 %v86
    %686 = vmatprep.subr.mxu0 0.0
    %687 = vmatpush1.msra.mxu0 %v87
    %688 = vmatprep.subr.mxu0 0.0
    %689 = vmatpush1.msra.mxu0 %v88
    %690 = vmatprep.subr.mxu0 0.0
    %691 = vmatpush1.msra.mxu0 %v89
    %692 = vmatprep.subr.mxu0 0.0
    %693 = vmatpush1.msra.mxu0 %v90
    %694 = vmatprep.subr.mxu0 0.0
    %695 = vmatpush1.msra.mxu0 %v91
    %696 = vmatprep.subr.mxu0 0.0
    %697 = vmatpush1.msra.mxu0 0.0
    %698 = vmatprep.subr.mxu0 0.0
    %699 = vmatpush1.msra.mxu0 0.0
    %700 = vmatprep.subr.mxu0 0.0
    %701 = vmatpush1.msra.mxu0 0.0
    %702 = vmatprep.subr.mxu0 0.0
    %703 = vmatpush1.msra.mxu0 0.0
    %704 = vmatprep.subr.mxu0 0.0
    %705 = vmatpush1.msra.mxu0 0.0
    %706 = vmatprep.subr.mxu0 0.0
    %707 = vmatpush1.msra.mxu0 0.0
    %708 = vmatprep.subr.mxu0 0.0
    %709 = vmatpush1.msra.mxu0 0.0
    %710 = vmatprep.subr.mxu0 0.0
    %711 = vmatpush1.msra.mxu0 0.0
    %712 = vmatprep.subr.mxu0 0.0
    %713 = vmatpush1.msra.mxu0 0.0
    %714 = vmatprep.subr.mxu0 0.0
    %715 = vmatpush1.msra.mxu0 0.0
    %716 = vmatprep.subr.mxu0 0.0
    %717 = vmatpush1.msra.mxu0 0.0
    %718 = vmatprep.subr.mxu0 0.0
    %719 = vmatpush1.msra.mxu0 0.0
    %720 = vmatprep.subr.mxu0 0.0
    %721 = vmatpush1.msra.mxu0 0.0
    %722 = vmatprep.subr.mxu0 0.0
    %723 = vmatpush1.msra.mxu0 0.0
    %724 = vmatprep.subr.mxu0 0.0
    %725 = vmatpush1.msra.mxu0 0.0
    %726 = vmatprep.subr.mxu0 0.0
    %727 = vmatpush1.msra.mxu0 0.0
    %728 = vmatprep.mubr.f32.mxu0 0.0
    %729 = vmatmul.mubr.f32.gmra.mrb[0].mxu0 %v182
    %v730 = vpop.f32.mrb[0].mxu0
    %v731 = vadd.f32 0.0, %v730
    %v732 = vpop.f32.mrb[0].mxu0
    %733 = vdwg.mxu0
    %v734 = vadd.f32 %v177, %v731
    %v735 = vtanh.pop %v734
    %v737 = vlaneseq
    %v738 = vshrl.u32 %v737, 7
    %v739 = vsub.s32 0, %v738
    %v740 = vrot.slane %v95, %v739
    %v742 = vmul.f32 %v734, %v740
    %v744 = vlaneseq
    %v745 = vshrl.u32 %v744, 7
    %v746 = vsub.s32 0, %v745
    %v747 = vrot.slane %v94, %v746
    %v749 = vmul.f32 %v735, %v747
    %v750 = vadd.f32 %v742, %v749
    %751 = vadd.xlane.f32.xlu0 %v750
    %v752 = vpop.xlane.xlu0 %751
    %v754 = vlaneseq
    %v755 = vshrl.u32 %v754, 7
    %v756 = vsub.s32 0, %v755
    %v757 = vrot.slane %v96, %v756
    %v759 = vadd.f32 %v752, %v757
    %v760 = vxor.u32 %v759, 2147483648
    %v761 = vmul.f32 %v760, 1.442695
    %v762 = vpow.pop %v761
    %v763 = vadd.f32 %v762, 1.0
    %v764 = vrcp.pop %v763
    %v765 = vmul.f32 1.0, %v764
    %v767 = vlaneseq
    %v768 = vshrl.u32 %v767, 7
    %v769 = vsub.s32 0, %v768
    %v770 = vrot.slane %v93, %v769
    %v772 = vmul.f32 %v770, %v182
    %v774 = vlaneseq
    %v775 = vshrl.u32 %v774, 7
    %v776 = vsub.s32 0, %v775
    %v777 = vrot.slane %v92, %v776
    %v779 = vmul.f32 %v777, %v735
    %v780 = vadd.f32 %v772, %v779
    %v781 = vmul.f32 %v184, %v765
    %v782 = vadd.f32 %v183, %v781
    %v783 = vadd.f32 %v782, %v765
    %vm784 = vcmp.gt.f32.partialorder %v783, 0.99
    %v785 = vsel %vm784, 1, 0
    %v786 = vcvt.s32.f32 %v785
    %v787 = vmul.f32 %v184, %v786
    %v788 = vsub.f32 %v184, %v787
    %v789 = vadd.f32 %v187, %v788
    %v790 = vsub.f32 1.0, %v782
    %v791 = vmul.f32 %v787, %v790
    %v792 = vadd.f32 %v781, %v791
    %794 = vset.pattern.permute.xlu0 0
    %795 = vperm.xlu0 %794, %v792
    %v796 = vpop.permute.xlu0 %795
    %v798 = vmul.f32 %v796, %v780
    %v799 = vadd.f32 %v185, %v798
    %v800 = vadd.f32 %v186, %v781
    %801 = vmatprep.subr.mxu0 0.0
    %802 = vmatpush1.msra.mxu0 %v76
    %803 = vmatprep.subr.mxu0 0.0
    %804 = vmatpush1.msra.mxu0 %v77
    %805 = vmatprep.subr.mxu0 0.0
    %806 = vmatpush1.msra.mxu0 %v78
    %807 = vmatprep.subr.mxu0 0.0
    %808 = vmatpush1.msra.mxu0 %v79
    %809 = vmatprep.subr.mxu0 0.0
    %810 = vmatpush1.msra.mxu0 %v80
    %811 = vmatprep.subr.mxu0 0.0
    %812 = vmatpush1.msra.mxu0 %v81
    %813 = vmatprep.subr.mxu0 0.0
    %814 = vmatpush1.msra.mxu0 %v82
    %815 = vmatprep.subr.mxu0 0.0
    %816 = vmatpush1.msra.mxu0 %v83
    %817 = vmatprep.subr.mxu0 0.0
    %818 = vmatpush1.msra.mxu0 %v84
    %819 = vmatprep.subr.mxu0 0.0
    %820 = vmatpush1.msra.mxu0 %v85
    %821 = vmatprep.subr.mxu0 0.0
    %822 = vmatpush1.msra.mxu0 %v86
    %823 = vmatprep.subr.mxu0 0.0
    %824 = vmatpush1.msra.mxu0 %v87
    %825 = vmatprep.subr.mxu0 0.0
    %826 = vmatpush1.msra.mxu0 %v88
    %827 = vmatprep.subr.mxu0 0.0
    %828 = vmatpush1.msra.mxu0 %v89
    %829 = vmatprep.subr.mxu0 0.0
    %830 = vmatpush1.msra.mxu0 %v90
    %831 = vmatprep.subr.mxu0 0.0
    %832 = vmatpush1.msra.mxu0 %v91
    %833 = vmatprep.subr.mxu0 0.0
    %834 = vmatpush1.msra.mxu0 0.0
    %835 = vmatprep.subr.mxu0 0.0
    %836 = vmatpush1.msra.mxu0 0.0
    %837 = vmatprep.subr.mxu0 0.0
    %838 = vmatpush1.msra.mxu0 0.0
    %839 = vmatprep.subr.mxu0 0.0
    %840 = vmatpush1.msra.mxu0 0.0
    %841 = vmatprep.subr.mxu0 0.0
    %842 = vmatpush1.msra.mxu0 0.0
    %843 = vmatprep.subr.mxu0 0.0
    %844 = vmatpush1.msra.mxu0 0.0
    %845 = vmatprep.subr.mxu0 0.0
    %846 = vmatpush1.msra.mxu0 0.0
    %847 = vmatprep.subr.mxu0 0.0
    %848 = vmatpush1.msra.mxu0 0.0
    %849 = vmatprep.subr.mxu0 0.0
    %850 = vmatpush1.msra.mxu0 0.0
    %851 = vmatprep.subr.mxu0 0.0
    %852 = vmatpush1.msra.mxu0 0.0
    %853 = vmatprep.subr.mxu0 0.0
    %854 = vmatpush1.msra.mxu0 0.0
    %855 = vmatprep.subr.mxu0 0.0
    %856 = vmatpush1.msra.mxu0 0.0
    %857 = vmatprep.subr.mxu0 0.0
    %858 = vmatpush1.msra.mxu0 0.0
    %859 = vmatprep.subr.mxu0 0.0
    %860 = vmatpush1.msra.mxu0 0.0
    %861 = vmatprep.subr.mxu0 0.0
    %862 = vmatpush1.msra.mxu0 0.0
    %863 = vmatprep.subr.mxu0 0.0
    %864 = vmatpush1.msra.mxu0 0.0
    %865 = vmatprep.mubr.f32.mxu0 0.0
    %866 = vmatmul.mubr.f32.gmra.mrb[0].mxu0 %v780
    %v867 = vpop.f32.mrb[0].mxu0
    %v868 = vadd.f32 0.0, %v867
    %v869 = vpop.f32.mrb[0].mxu0
    %870 = vdwg.mxu0
    %v871 = vadd.f32 %v177, %v868
    %v872 = vtanh.pop %v871
    %v873 = vmul.f32 %v871, %v740
    %v874 = vmul.f32 %v872, %v747
    %v875 = vadd.f32 %v873, %v874
    %876 = vadd.xlane.f32.xlu0 %v875
    %v877 = vpop.xlane.xlu0 %876
    %v878 = vadd.f32 %v877, %v757
    %v879 = vxor.u32 %v878, 2147483648
    %v880 = vmul.f32 %v879, 1.442695
    %v881 = vpow.pop %v880
    %v882 = vadd.f32 %v881, 1.0
    %v883 = vrcp.pop %v882
    %v884 = vmul.f32 1.0, %v883
    %v885 = vmul.f32 %v770, %v780
    %v886 = vmul.f32 %v777, %v872
    %v887 = vadd.f32 %v885, %v886
    %v888 = vmul.f32 %v788, %v884
    %v889 = vadd.f32 %v782, %v888
    %v890 = vadd.f32 %v889, %v884
    %vm891 = vcmp.gt.f32.partialorder %v890, 0.99
    %v892 = vsel %vm891, 1, 0
    %v893 = vcvt.s32.f32 %v892
    %v894 = vmul.f32 %v788, %v893
    %v895 = vsub.f32 %v788, %v894
    %v896 = vadd.f32 %v789, %v895
    %v897 = vsub.f32 1.0, %v889
    %v898 = vmul.f32 %v894, %v897
    %v899 = vadd.f32 %v888, %v898
    %901 = vset.pattern.permute.xlu0 0
    %902 = vperm.xlu0 %901, %v899
    %v903 = vpop.permute.xlu0 %902
    %v905 = vmul.f32 %v903, %v887
    %v906 = vadd.f32 %v799, %v905
    %v907 = vadd.f32 %v800, %v888
    %908 = vmatprep.subr.mxu0 0.0
    %909 = vmatpush1.msra.mxu0 %v76
    %910 = vmatprep.subr.mxu0 0.0
    %911 = vmatpush1.msra.mxu0 %v77
    %912 = vmatprep.subr.mxu0 0.0
    %913 = vmatpush1.msra.mxu0 %v78
    %914 = vmatprep.subr.mxu0 0.0
    %915 = vmatpush1.msra.mxu0 %v79
    %916 = vmatprep.subr.mxu0 0.0
    %917 = vmatpush1.msra.mxu0 %v80
    %918 = vmatprep.subr.mxu0 0.0
    %919 = vmatpush1.msra.mxu0 %v81
    %920 = vmatprep.subr.mxu0 0.0
    %921 = vmatpush1.msra.mxu0 %v82
    %922 = vmatprep.subr.mxu0 0.0
    %923 = vmatpush1.msra.mxu0 %v83
    %924 = vmatprep.subr.mxu0 0.0
    %925 = vmatpush1.msra.mxu0 %v84
    %926 = vmatprep.subr.mxu0 0.0
    %927 = vmatpush1.msra.mxu0 %v85
    %928 = vmatprep.subr.mxu0 0.0
    %929 = vmatpush1.msra.mxu0 %v86
    %930 = vmatprep.subr.mxu0 0.0
    %931 = vmatpush1.msra.mxu0 %v87
    %932 = vmatprep.subr.mxu0 0.0
    %933 = vmatpush1.msra.mxu0 %v88
    %934 = vmatprep.subr.mxu0 0.0
    %935 = vmatpush1.msra.mxu0 %v89
    %936 = vmatprep.subr.mxu0 0.0
    %937 = vmatpush1.msra.mxu0 %v90
    %938 = vmatprep.subr.mxu0 0.0
    %939 = vmatpush1.msra.mxu0 %v91
    %940 = vmatprep.subr.mxu0 0.0
    %941 = vmatpush1.msra.mxu0 0.0
    %942 = vmatprep.subr.mxu0 0.0
    %943 = vmatpush1.msra.mxu0 0.0
    %944 = vmatprep.subr.mxu0 0.0
    %945 = vmatpush1.msra.mxu0 0.0
    %946 = vmatprep.subr.mxu0 0.0
    %947 = vmatpush1.msra.mxu0 0.0
    %948 = vmatprep.subr.mxu0 0.0
    %949 = vmatpush1.msra.mxu0 0.0
    %950 = vmatprep.subr.mxu0 0.0
    %951 = vmatpush1.msra.mxu0 0.0
    %952 = vmatprep.subr.mxu0 0.0
    %953 = vmatpush1.msra.mxu0 0.0
    %954 = vmatprep.subr.mxu0 0.0
    %955 = vmatpush1.msra.mxu0 0.0
    %956 = vmatprep.subr.mxu0 0.0
    %957 = vmatpush1.msra.mxu0 0.0
    %958 = vmatprep.subr.mxu0 0.0
    %959 = vmatpush1.msra.mxu0 0.0
    %960 = vmatprep.subr.mxu0 0.0
    %961 = vmatpush1.msra.mxu0 0.0
    %962 = vmatprep.subr.mxu0 0.0
    %963 = vmatpush1.msra.mxu0 0.0
    %964 = vmatprep.subr.mxu0 0.0
    %965 = vmatpush1.msra.mxu0 0.0
    %966 = vmatprep.subr.mxu0 0.0
    %967 = vmatpush1.msra.mxu0 0.0
    %968 = vmatprep.subr.mxu0 0.0
    %969 = vmatpush1.msra.mxu0 0.0
    %970 = vmatprep.subr.mxu0 0.0
    %971 = vmatpush1.msra.mxu0 0.0
    %972 = vmatprep.mubr.f32.mxu0 0.0
    %973 = vmatmul.mubr.f32.gmra.mrb[0].mxu0 %v887
    %v974 = vpop.f32.mrb[0].mxu0
    %v975 = vadd.f32 0.0, %v974
    %v976 = vpop.f32.mrb[0].mxu0
    %977 = vdwg.mxu0
    %v978 = vadd.f32 %v177, %v975
    %v979 = vtanh.pop %v978
    %v980 = vmul.f32 %v978, %v740
    %v981 = vmul.f32 %v979, %v747
    %v982 = vadd.f32 %v980, %v981
    %983 = vadd.xlane.f32.xlu0 %v982
    %v984 = vpop.xlane.xlu0 %983
    %v985 = vadd.f32 %v984, %v757
    %v986 = vxor.u32 %v985, 2147483648
    %v987 = vmul.f32 %v986, 1.442695
    %v988 = vpow.pop %v987
    %v989 = vadd.f32 %v988, 1.0
    %v990 = vrcp.pop %v989
    %v991 = vmul.f32 1.0, %v990
    %v992 = vmul.f32 %v770, %v887
    %v993 = vmul.f32 %v777, %v979
    %v994 = vadd.f32 %v992, %v993
    %v995 = vmul.f32 %v895, %v991
    %v996 = vadd.f32 %v889, %v995
    %v997 = vadd.f32 %v996, %v991
    %vm998 = vcmp.gt.f32.partialorder %v997, 0.99
    %v999 = vsel %vm998, 1, 0
    %v1000 = vcvt.s32.f32 %v999
    %v1001 = vmul.f32 %v895, %v1000
    %v1002 = vsub.f32 %v895, %v1001
    %v1003 = vadd.f32 %v896, %v1002
    %v1004 = vsub.f32 1.0, %v996
    %v1005 = vmul.f32 %v1001, %v1004
    %v1006 = vadd.f32 %v995, %v1005
    %1008 = vset.pattern.permute.xlu0 0
    %1009 = vperm.xlu0 %1008, %v1006
    %v1010 = vpop.permute.xlu0 %1009
    %v1012 = vmul.f32 %v1010, %v994
    %v1013 = vadd.f32 %v906, %v1012
    %v1014 = vadd.f32 %v907, %v995
    %v1015 = vmul.f32 %v1002, %v1004
    %1017 = vset.pattern.permute.xlu0 0
    %1018 = vperm.xlu0 %1017, %v1015
    %v1019 = vpop.permute.xlu0 %1018
    %v1021 = vmul.f32 %v1019, %v994
    %v1022 = vadd.f32 %v1013, %v1021
    %1023 = vst [vmem:[#allocation9] sm:$0xff] %v1022
    %vm1024 = vcmask 7168
    %v1025 = vsel %vm1024, %v1014, 0.0
    %1026 = vadd.xlane.f32.xlu0 %v1025
    %v1027 = vpop.xlane.xlu0 %1026
    %v1028 = vrot.slane %v1027, 4
    %v1029 = vadd.f32 %v1027, %v1028
    %v1030 = vrot.slane %v1029, 2
    %v1031 = vadd.f32 %v1029, %v1030
    %v1032 = vrot.slane %v1031, 1
    %v1033 = vadd.f32 %v1031, %v1032
    %s1034 = vtos %v1033
    %v1035 = vrcp.pop 8.0
    %s1036 = vtos %v1035
    %s1037 = smul.f32 %s1034, %s1036
    %v1038 = vstv %s1037
    %v1039 = vmul.f32 %v1038, -0.01
    %vm1040 = vcmask 0
    %1041 = vst.msk [vmem:[#allocation10] sm:$0x1] %vm1040, %v1039
    %v1042 = vadd.f32 %v1003, 1.0
    %1043 = vst.msk [vmem:[%s10] sm:$0xff] %vm1024, %v1042
    // Predicated region
    $region53: #{tpu_custom_call.1} parent=1 // pred_check
      _
    $region54: #{tpu_custom_call.1} parent=1 // pred_check_branch
      %1045 = sbr.rel (0) target = $region56
    $region55: #{tpu_custom_call.1} parent=1 // pred_region
      %s1047 = ssub.s32 128, 128
      %1048 = vsyncadd [#allocation5], %s1047
      %s1050 = sshll.u32 [#allocation9], 4
      %s1051 = int_to_ptr.vmem [resolvable:$true] %s1050
      %1053 = dma.vmem_to_hbm [thread:$0]  %s1051, 128, %s8, [#allocation5]
    $region56: #{tpu_custom_call.1} parent=1 // pred_fallthru
      _
    // Predicated region
    $region57: #{tpu_custom_call.1} parent=1 // pred_check
      _
    $region58: #{tpu_custom_call.1} parent=1 // pred_check_branch
      %1055 = sbr.rel (0) target = $region60
    $region59: #{tpu_custom_call.1} parent=1 // pred_region
      %s1057 = ssub.s32 16, 16
      %1058 = vsyncadd [#allocation11], %s1057
      %s1060 = sshll.u32 [#allocation10], 4
      %s1061 = int_to_ptr.vmem [resolvable:$true] %s1060
      %1063 = dma.vmem_to_hbm [thread:$0]  %s1061, 16, %s9, [#allocation11]
    $region60: #{tpu_custom_call.1} parent=1 // pred_fallthru
      _
    // Predicated region
    $region61: #{tpu_custom_call.1} parent=1 // pred_check
      _
    $region62: #{tpu_custom_call.1} parent=1 // pred_check_branch
      %1065 = sbr.rel (0) target = $region64
    $region63: #{tpu_custom_call.1} parent=1 // pred_region
      _
    $region64: #{tpu_custom_call.1} parent=1 // pred_fallthru
      _
    // Predicated region
    $region65: #{tpu_custom_call.1} parent=1 // pred_check
      _
    $region66: #{tpu_custom_call.1} parent=1 // pred_check_branch
      %1067 = sbr.rel (0) target = $region68
    $region67: #{tpu_custom_call.1} parent=1 // pred_region
      %1068 = dma.done [#allocation5], 128
    $region68: #{tpu_custom_call.1} parent=1 // pred_fallthru
      _
    // Predicated region
    $region69: #{tpu_custom_call.1} parent=1 // pred_check
      _
    $region70: #{tpu_custom_call.1} parent=1 // pred_check_branch
      %1070 = sbr.rel (0) target = $region72
    $region71: #{tpu_custom_call.1} parent=1 // pred_region
      %1071 = dma.done [#allocation11], 16
    $region72: #{tpu_custom_call.1} parent=1 // pred_fallthru
      _
    // Predicated region
    $region73: #{tpu_custom_call.1} parent=1 // pred_check
      _
    $region74: #{tpu_custom_call.1} parent=1 // pred_check_branch
      %1073 = sbr.rel (0) target = $region76
    $region75: #{tpu_custom_call.1} parent=1 // pred_region
      _
    $region76: #{tpu_custom_call.1} parent=1 // pred_fallthru
      _
    %1074 = vsyncpa [#allocation4], 1
    %1075 = vsyncpa [#allocation7], 1
    %1076 = vsyncpa [#allocation5], 1
    %1077 = vsyncpa [#allocation11], 1

</llo_original>
